<compile_context>
chip_gen: v7x
topology: tpu7x:2x2x1
jax: 0.10.0
libtpu: 0.0.40
codegen_flags: <defaults>
</compile_context>

<pallas_src>
import functools
import math

import numpy as np
import jax
import jax.numpy as jnp
from jax import lax
from jax.experimental import pallas as pl
from jax.experimental.pallas import tpu as pltpu


# ---------------------------------------------------------------------------
# In-kernel helpers
# ---------------------------------------------------------------------------

def _leaky(x, slope=0.2):
    return jnp.where(x > 0, x, slope * x)


def _softplus(x):
    # stable softplus;  log(sigmoid(x)) = -softplus(-x)
    return jnp.maximum(x, 0.0) + jnp.log(1.0 + jnp.exp(-jnp.abs(x)))


# ---------------------------------------------------------------------------
# Fused forward kernel
# ---------------------------------------------------------------------------

def vae_fused_kernel(w_ref, b_ref, s1e_ref, s2e_ref, s1d_ref, s2d_ref,
                     yenc_ref, ylab_ref, eps_ref, out_ref, *, meta, kl_weight):
    f32 = jnp.float32
    offs, boffs = meta["offs"], meta["boffs"]
    dot = functools.partial(jnp.dot, preferred_element_type=f32)

    def W(name):                                   # static slice of the weight slab
        r0, nr, nc = offs[name]
        return w_ref[r0:r0 + nr, 0:nc]

    def Bv(name):                                  # static slice of the bias slab
        i, nc = boffs[name]
        return b_ref[i:i + 1, 0:nc]

    # ------------------------- encoder -------------------------
    # layer 1 folded over the init-time split of the interleaved [s1|s2|y] weight
    h = _leaky(dot(s1e_ref[...], W("w_s1")) + dot(s2e_ref[...], W("w_s2"))
               + dot(yenc_ref[...], W("w_y")) + Bv("b_e1"))
    h = _leaky(dot(h, W("w_e2")) + Bv("b_e2"))
    h = _leaky(dot(h, W("w_e3")) + Bv("b_e3"))
    mean = dot(h, W("w_m")) + Bv("b_m")                         # (B, L)
    log_var = dot(h, W("w_v")) + Bv("b_v")                      # (B, L)

    # --------------------- reparameterization ------------------
    z = mean + jnp.exp(0.5 * log_var) * eps_ref[...]            # (B, L)

    # --------------------------- decoder ------------------------
    # latent contribution of layer 1: once per batch row, replicated to every
    # (a, s) row via a precomputed 0/1 matmul (no broadcast/concat/reshape).
    zc_rep = dot(W("gather"), dot(z, W("w_d1z")))               # (N, H)
    w_d1o, w_d2, w_d3 = W("w_d1o"), W("w_d2"), W("w_d3")
    b_d1, b_d2, b_d3 = Bv("b_d1"), Bv("b_d2"), Bv("b_d3")

    def decode(x):                                              # x: (N, D)
        hd = _leaky(dot(x, w_d1o) + zc_rep + b_d1)
        hd = _leaky(dot(hd, w_d2) + b_d2)
        hd = _leaky(dot(hd, w_d3) + b_d3)
        return hd                                               # (N, H)

    hd_diff = decode(s1d_ref[...]) - decode(s2d_ref[...])       # (N, H)

    # r_hat1 - r_hat2 (already /scaling, folded into the reduce matrix).
    # The decoder output bias b_d4 cancels exactly in this difference, so the
    # last linear layer is applied AFTER the segment reduction (lane-dense).
    logits = dot(dot(W("reduce"), hd_diff), W("w_d4"))          # (B*A, 1)

    # --------------------------- losses ---------------------------
    y = ylab_ref[...]                                           # (B*A, 1)
    # BCE(sigmoid(logits), y), reduction='sum', stable log-sigmoid form
    rec = jnp.sum(y * _softplus(-logits) + (1.0 - y) * _softplus(logits))
    pred = (logits > 0.0).astype(f32)                           # == (p_hat > 0.5)
    acc = jnp.mean((pred == y).astype(f32))
    kl = -jnp.sum(1.0 + log_var - mean * mean - jnp.exp(log_var))
    loss = rec + kl_weight * kl

    # pack the four scalars into one lane-dense (1, 128) output row
    col = lax.broadcasted_iota(jnp.int32, (1, 128), 1)
    out_ref[...] = (jnp.where(col == 0, loss, 0.0)
                    + jnp.where(col == 1, rec, 0.0)
                    + jnp.where(col == 2, kl, 0.0)
                    + jnp.where(col == 3, acc, 0.0))


# ---------------------------------------------------------------------------
# Wrapper
# ---------------------------------------------------------------------------

def vae_forward(packed, s1, s2, y, eps, *, meta, kl_weight=1.0):
    """Mirrors VAEModel.forward (learned_prior=False, flow_prior=False, no annealer)."""
    B, A, S, D = s1.shape
    f32 = jnp.float32

    # pure reshapes of contiguous arrays (no concat / pad / HBM intermediates)
    s1e = s1.reshape(B, A * S * D)
    s2e = s2.reshape(B, A * S * D)
    s1d = s1.reshape(B * A * S, D)
    s2d = s2.reshape(B * A * S, D)
    yenc = y.reshape(B, A).astype(f32)
    ylab = y.reshape(B * A, 1).astype(f32)

    H, L, N = meta["H"], meta["L"], meta["N"]
    flops = 2 * (2 * B * A * S * D * H + B * A * H + 2 * B * H * H + 2 * B * H * L
                 + B * L * H + N * B * H + 2 * N * D * H + 4 * N * H * H
                 + B * A * N * H + B * A * H)
    transcendentals = 4 * B * L + 4 * B * A
    ins = (packed["wslab"], packed["bslab"], s1e, s2e, s1d, s2d, yenc, ylab, eps)
    bytes_accessed = sum(int(x.size) * x.dtype.itemsize for x in ins) + 128 * 4

    kernel = functools.partial(vae_fused_kernel, meta=meta, kl_weight=float(kl_weight))
    vmem = pl.BlockSpec(memory_space=pltpu.MemorySpace.VMEM)

    out = pl.pallas_call(
        kernel,
        out_shape=jax.ShapeDtypeStruct((1, 128), jnp.float32),
        in_specs=[vmem] * len(ins),
        out_specs=vmem,
        cost_estimate=pl.CostEstimate(flops=flops,
                                      transcendentals=transcendentals,
                                      bytes_accessed=bytes_accessed),
    )(*ins)

    loss = out[0, 0]
    metrics = {
        "loss": loss,
        "reconstruction_loss": out[0, 1],
        "kld_loss": out[0, 2],
        "accuracy": out[0, 3],
        "kl_weight": kl_weight,
    }
    return loss, metrics


# ---------------------------------------------------------------------------
# Init: PyTorch nn.Linear-style uniform init, then pack into two slabs
# ---------------------------------------------------------------------------

def _linear_init(key, fan_in, fan_out):
    kw, kb = jax.random.split(key)
    bound = 1.0 / math.sqrt(fan_in)
    w = np.asarray(jax.random.uniform(kw, (fan_in, fan_out), jnp.float32, -bound, bound))
    b = np.asarray(jax.random.uniform(kb, (1, fan_out), jnp.float32, -bound, bound))
    return w, b


def init_model(key, *, batch, annotation, segment, obs_dim, hidden, latent, scaling):
    B, A, S, D, H, L = batch, annotation, segment, obs_dim, hidden, latent
    enc_in = A * (2 * S * D + 1)
    N = B * A * S
    keys = jax.random.split(key, 9)

    w1, b_e1 = _linear_init(keys[0], enc_in, H)
    w_e2, b_e2 = _linear_init(keys[1], H, H)
    w_e3, b_e3 = _linear_init(keys[2], H, H)
    w_m, b_m = _linear_init(keys[3], H, L)
    w_v, b_v = _linear_init(keys[4], H, L)
    w_d1, b_d1 = _linear_init(keys[5], D + L, H)
    w_d2, b_d2 = _linear_init(keys[6], H, H)
    w_d3, b_d3 = _linear_init(keys[7], H, H)
    w_d4, _b_d4 = _linear_init(keys[8], H, 1)   # b_d4 cancels in r_hat1 - r_hat2

    # split encoder layer-1 weight rows by the interleaved column order of
    # torch.cat([s1_, s2_, y], dim=-1).view(B, -1)
    blk = 2 * S * D + 1
    w_s1 = np.concatenate([w1[a * blk: a * blk + S * D] for a in range(A)], axis=0)
    w_s2 = np.concatenate([w1[a * blk + S * D: a * blk + 2 * S * D] for a in range(A)], axis=0)
    w_y = np.stack([w1[a * blk + 2 * S * D] for a in range(A)], axis=0)          # (A, H)

    w_d1o, w_d1z = w_d1[:D], w_d1[D:]           # split decoder layer-1 = [obs | z]

    # constant selection matrices (pure functions of B, A, S, scaling)
    r = np.arange(N)
    gather = (r[:, None] // (A * S) == np.arange(B)[None, :]).astype(np.float32)  # (N, B)
    reduce_half = ((r[None, :] // S) == np.arange(B * A)[:, None]).astype(np.float32) / scaling
    # each reduce row has exactly S nonzeros of 1/scaling -> (hd1-hd2) path makes
    # the decoder output bias cancel exactly (structural; no b_d4 needed).
    assert np.allclose(reduce_half.sum(axis=1), S / scaling)

    # ---- weight + constant slab: lane-dense (rows, 128), 8-aligned row offsets
    entries = [("w_s1", w_s1), ("w_s2", w_s2), ("w_y", w_y),
               ("w_e2", w_e2), ("w_e3", w_e3), ("w_m", w_m), ("w_v", w_v),
               ("w_d1o", w_d1o), ("w_d1z", w_d1z), ("w_d2", w_d2), ("w_d3", w_d3),
               ("w_d4", w_d4), ("gather", gather), ("reduce", reduce_half)]
    offs, rows = {}, 0
    for name, arr in entries:
        offs[name] = (rows, arr.shape[0], arr.shape[1])
        rows += ((arr.shape[0] + 7) // 8) * 8
    wslab = np.zeros((rows, 128), np.float32)
    for name, arr in entries:
        r0, nr, nc = offs[name]
        wslab[r0:r0 + nr, :nc] = arr

    # ---- bias slab: one bias per row of an (8, 128) tile
    bias_entries = [("b_e1", b_e1), ("b_e2", b_e2), ("b_e3", b_e3),
                    ("b_m", b_m), ("b_v", b_v),
                    ("b_d1", b_d1), ("b_d2", b_d2), ("b_d3", b_d3)]
    bslab = np.zeros((8, 128), np.float32)
    boffs = {}
    for i, (name, b) in enumerate(bias_entries):
        bslab[i, :b.shape[1]] = b[0]
        boffs[name] = (i, b.shape[1])

    packed = {"wslab": jnp.asarray(wslab), "bslab": jnp.asarray(bslab)}
    meta = dict(B=B, A=A, S=S, D=D, H=H, L=L, N=N, offs=offs, boffs=boffs)
    return packed, meta


# ---------------------------------------------------------------------------
# Main
# ---------------------------------------------------------------------------

if __name__ == "__main__":
    # Small shapes consistent with the module's forward().
    B, A, S, D = 2, 4, 8, 6                  # batch, annotation_size, size_segment, obs_dim
    hidden_dim, latent_dim = 32, 8
    scaling, kl_weight = 1.0, 1.0

    key = jax.random.PRNGKey(0)
    k_par, k_s1, k_s2, k_y, k_eps = jax.random.split(key, 5)

    packed, meta = init_model(k_par, batch=B, annotation=A, segment=S, obs_dim=D,
                              hidden=hidden_dim, latent=latent_dim, scaling=scaling)
    s1 = jax.random.normal(k_s1, (B, A, S, D), jnp.float32)
    s2 = jax.random.normal(k_s2, (B, A, S, D), jnp.float32)
    y = jax.random.bernoulli(k_y, 0.5, (B, A, 1)).astype(jnp.float32)
    eps = jax.random.normal(k_eps, (B, latent_dim), jnp.float32)   # reparam noise

    fwd = jax.jit(functools.partial(vae_forward, meta=meta, kl_weight=kl_weight))
    loss, metrics = fwd(packed, s1, s2, y, eps)
    jax.block_until_ready(loss)
    _ = {k: (float(v) if hasattr(v, "shape") else v) for k, v in metrics.items()}
    print("KERNEL_OK")
</pallas_src>

<mosaic_0001>
module attributes {stable_mosaic.version = 11 : i64} {
  func.func @vae_fused_kernel(%arg0: memref<704x128xf32, #tpu.memory_space<vmem>>, %arg1: memref<8x128xf32, #tpu.memory_space<vmem>>, %arg2: memref<2x192xf32, #tpu.memory_space<vmem>>, %arg3: memref<2x192xf32, #tpu.memory_space<vmem>>, %arg4: memref<64x6xf32, #tpu.memory_space<vmem>>, %arg5: memref<64x6xf32, #tpu.memory_space<vmem>>, %arg6: memref<2x4xf32, #tpu.memory_space<vmem>>, %arg7: memref<8x1xf32, #tpu.memory_space<vmem>>, %arg8: memref<2x8xf32, #tpu.memory_space<vmem>>, %arg9: memref<1x128xf32, #tpu.memory_space<vmem>>) attributes {dimension_semantics = [], scalar_prefetch = 0 : i64, scratch_operands = 0 : i64, tpu.core_type = #tpu.core_type<tc>} {
    %c0 = arith.constant 0 : index
    %c0_0 = arith.constant 0 : index
    %0 = vector.load %arg2[%c0, %c0_0] : memref<2x192xf32, #tpu.memory_space<vmem>>, vector<2x192xf32>
    %c0_1 = arith.constant 0 : index
    %c0_2 = arith.constant 0 : index
    %1 = vector.load %arg0[%c0_1, %c0_2] : memref<704x128xf32, #tpu.memory_space<vmem>>, vector<192x32xf32>
    %cst = arith.constant dense<0.000000e+00> : vector<2x32xf32>
    %2 = tpu.matmul %0, %1, %cst {dimension_numbers = #tpu.dot_dimension_numbers<[1], [0], [0], [1], [0, 0, 1, 1], [], []>} : vector<2x192xf32>, vector<192x32xf32>, vector<2x32xf32> -> vector<2x32xf32>
    %c0_3 = arith.constant 0 : index
    %c0_4 = arith.constant 0 : index
    %3 = vector.load %arg3[%c0_3, %c0_4] : memref<2x192xf32, #tpu.memory_space<vmem>>, vector<2x192xf32>
    %c192 = arith.constant 192 : index
    %c0_5 = arith.constant 0 : index
    %4 = vector.load %arg0[%c192, %c0_5] : memref<704x128xf32, #tpu.memory_space<vmem>>, vector<192x32xf32>
    %cst_6 = arith.constant dense<0.000000e+00> : vector<2x32xf32>
    %5 = tpu.matmul %3, %4, %cst_6 {dimension_numbers = #tpu.dot_dimension_numbers<[1], [0], [0], [1], [0, 0, 1, 1], [], []>} : vector<2x192xf32>, vector<192x32xf32>, vector<2x32xf32> -> vector<2x32xf32>
    %6 = arith.addf %2, %5 : vector<2x32xf32>
    %c0_7 = arith.constant 0 : index
    %c0_8 = arith.constant 0 : index
    %7 = vector.load %arg6[%c0_7, %c0_8] : memref<2x4xf32, #tpu.memory_space<vmem>>, vector<2x4xf32>
    %c384 = arith.constant 384 : index
    %c0_9 = arith.constant 0 : index
    %8 = vector.load %arg0[%c384, %c0_9] : memref<704x128xf32, #tpu.memory_space<vmem>>, vector<4x32xf32>
    %cst_10 = arith.constant dense<0.000000e+00> : vector<2x32xf32>
    %9 = tpu.matmul %7, %8, %cst_10 {dimension_numbers = #tpu.dot_dimension_numbers<[1], [0], [0], [1], [0, 0, 1, 1], [], []>} : vector<2x4xf32>, vector<4x32xf32>, vector<2x32xf32> -> vector<2x32xf32>
    %10 = arith.addf %6, %9 : vector<2x32xf32>
    %c0_11 = arith.constant 0 : index
    %c0_12 = arith.constant 0 : index
    %11 = vector.load %arg1[%c0_11, %c0_12] : memref<8x128xf32, #tpu.memory_space<vmem>>, vector<1x32xf32>
    %12 = vector.broadcast %11 : vector<1x32xf32> to vector<2x32xf32>
    %13 = arith.addf %10, %12 : vector<2x32xf32>
    %cst_13 = arith.constant 0.000000e+00 : f32
    %14 = vector.broadcast %cst_13 : f32 to vector<2x32xf32>
    %15 = arith.cmpf ogt, %13, %14 : vector<2x32xf32>
    %cst_14 = arith.constant 2.000000e-01 : f32
    %16 = vector.broadcast %cst_14 : f32 to vector<2x32xf32>
    %17 = arith.mulf %16, %13 : vector<2x32xf32>
    %18 = arith.select %15, %13, %17 : vector<2x32xi1>, vector<2x32xf32>
    %c392 = arith.constant 392 : index
    %c0_15 = arith.constant 0 : index
    %19 = vector.load %arg0[%c392, %c0_15] : memref<704x128xf32, #tpu.memory_space<vmem>>, vector<32x32xf32>
    %cst_16 = arith.constant dense<0.000000e+00> : vector<2x32xf32>
    %20 = tpu.matmul %18, %19, %cst_16 {dimension_numbers = #tpu.dot_dimension_numbers<[1], [0], [0], [1], [0, 0, 1, 1], [], []>} : vector<2x32xf32>, vector<32x32xf32>, vector<2x32xf32> -> vector<2x32xf32>
    %c1 = arith.constant 1 : index
    %c0_17 = arith.constant 0 : index
    %21 = vector.load %arg1[%c1, %c0_17] : memref<8x128xf32, #tpu.memory_space<vmem>>, vector<1x32xf32>
    %22 = vector.broadcast %21 : vector<1x32xf32> to vector<2x32xf32>
    %23 = arith.addf %20, %22 : vector<2x32xf32>
    %cst_18 = arith.constant 0.000000e+00 : f32
    %24 = vector.broadcast %cst_18 : f32 to vector<2x32xf32>
    %25 = arith.cmpf ogt, %23, %24 : vector<2x32xf32>
    %cst_19 = arith.constant 2.000000e-01 : f32
    %26 = vector.broadcast %cst_19 : f32 to vector<2x32xf32>
    %27 = arith.mulf %26, %23 : vector<2x32xf32>
    %28 = arith.select %25, %23, %27 : vector<2x32xi1>, vector<2x32xf32>
    %c424 = arith.constant 424 : index
    %c0_20 = arith.constant 0 : index
    %29 = vector.load %arg0[%c424, %c0_20] : memref<704x128xf32, #tpu.memory_space<vmem>>, vector<32x32xf32>
    %cst_21 = arith.constant dense<0.000000e+00> : vector<2x32xf32>
    %30 = tpu.matmul %28, %29, %cst_21 {dimension_numbers = #tpu.dot_dimension_numbers<[1], [0], [0], [1], [0, 0, 1, 1], [], []>} : vector<2x32xf32>, vector<32x32xf32>, vector<2x32xf32> -> vector<2x32xf32>
    %c2 = arith.constant 2 : index
    %c0_22 = arith.constant 0 : index
    %31 = vector.load %arg1[%c2, %c0_22] : memref<8x128xf32, #tpu.memory_space<vmem>>, vector<1x32xf32>
    %32 = vector.broadcast %31 : vector<1x32xf32> to vector<2x32xf32>
    %33 = arith.addf %30, %32 : vector<2x32xf32>
    %cst_23 = arith.constant 0.000000e+00 : f32
    %34 = vector.broadcast %cst_23 : f32 to vector<2x32xf32>
    %35 = arith.cmpf ogt, %33, %34 : vector<2x32xf32>
    %cst_24 = arith.constant 2.000000e-01 : f32
    %36 = vector.broadcast %cst_24 : f32 to vector<2x32xf32>
    %37 = arith.mulf %36, %33 : vector<2x32xf32>
    %38 = arith.select %35, %33, %37 : vector<2x32xi1>, vector<2x32xf32>
    %c456 = arith.constant 456 : index
    %c0_25 = arith.constant 0 : index
    %39 = vector.load %arg0[%c456, %c0_25] : memref<704x128xf32, #tpu.memory_space<vmem>>, vector<32x8xf32>
    %cst_26 = arith.constant dense<0.000000e+00> : vector<2x8xf32>
    %40 = tpu.matmul %38, %39, %cst_26 {dimension_numbers = #tpu.dot_dimension_numbers<[1], [0], [0], [1], [0, 0, 1, 1], [], []>} : vector<2x32xf32>, vector<32x8xf32>, vector<2x8xf32> -> vector<2x8xf32>
    %c3 = arith.constant 3 : index
    %c0_27 = arith.constant 0 : index
    %41 = vector.load %arg1[%c3, %c0_27] : memref<8x128xf32, #tpu.memory_space<vmem>>, vector<1x8xf32>
    %42 = vector.broadcast %41 : vector<1x8xf32> to vector<2x8xf32>
    %43 = arith.addf %40, %42 : vector<2x8xf32>
    %c488 = arith.constant 488 : index
    %c0_28 = arith.constant 0 : index
    %44 = vector.load %arg0[%c488, %c0_28] : memref<704x128xf32, #tpu.memory_space<vmem>>, vector<32x8xf32>
    %cst_29 = arith.constant dense<0.000000e+00> : vector<2x8xf32>
    %45 = tpu.matmul %38, %44, %cst_29 {dimension_numbers = #tpu.dot_dimension_numbers<[1], [0], [0], [1], [0, 0, 1, 1], [], []>} : vector<2x32xf32>, vector<32x8xf32>, vector<2x8xf32> -> vector<2x8xf32>
    %c4 = arith.constant 4 : index
    %c0_30 = arith.constant 0 : index
    %46 = vector.load %arg1[%c4, %c0_30] : memref<8x128xf32, #tpu.memory_space<vmem>>, vector<1x8xf32>
    %47 = vector.broadcast %46 : vector<1x8xf32> to vector<2x8xf32>
    %48 = arith.addf %45, %47 : vector<2x8xf32>
    %cst_31 = arith.constant 5.000000e-01 : f32
    %49 = vector.broadcast %cst_31 : f32 to vector<2x8xf32>
    %50 = arith.mulf %49, %48 : vector<2x8xf32>
    %51 = math.exp %50 : vector<2x8xf32>
    %c0_32 = arith.constant 0 : index
    %c0_33 = arith.constant 0 : index
    %52 = vector.load %arg8[%c0_32, %c0_33] : memref<2x8xf32, #tpu.memory_space<vmem>>, vector<2x8xf32>
    %53 = arith.mulf %51, %52 : vector<2x8xf32>
    %54 = arith.addf %43, %53 : vector<2x8xf32>
    %c632 = arith.constant 632 : index
    %c0_34 = arith.constant 0 : index
    %55 = vector.load %arg0[%c632, %c0_34] : memref<704x128xf32, #tpu.memory_space<vmem>>, vector<64x2xf32>
    %c528 = arith.constant 528 : index
    %c0_35 = arith.constant 0 : index
    %56 = vector.load %arg0[%c528, %c0_35] : memref<704x128xf32, #tpu.memory_space<vmem>>, vector<8x32xf32>
    %cst_36 = arith.constant dense<0.000000e+00> : vector<2x32xf32>
    %57 = tpu.matmul %54, %56, %cst_36 {dimension_numbers = #tpu.dot_dimension_numbers<[1], [0], [0], [1], [0, 0, 1, 1], [], []>} : vector<2x8xf32>, vector<8x32xf32>, vector<2x32xf32> -> vector<2x32xf32>
    %cst_37 = arith.constant dense<0.000000e+00> : vector<64x32xf32>
    %58 = tpu.matmul %55, %57, %cst_37 {dimension_numbers = #tpu.dot_dimension_numbers<[1], [0], [0], [1], [0, 0, 1, 1], [], []>} : vector<64x2xf32>, vector<2x32xf32>, vector<64x32xf32> -> vector<64x32xf32>
    %c520 = arith.constant 520 : index
    %c0_38 = arith.constant 0 : index
    %59 = vector.load %arg0[%c520, %c0_38] : memref<704x128xf32, #tpu.memory_space<vmem>>, vector<6x32xf32>
    %c536 = arith.constant 536 : index
    %c0_39 = arith.constant 0 : index
    %60 = vector.load %arg0[%c536, %c0_39] : memref<704x128xf32, #tpu.memory_space<vmem>>, vector<32x32xf32>
    %c568 = arith.constant 568 : index
    %c0_40 = arith.constant 0 : index
    %61 = vector.load %arg0[%c568, %c0_40] : memref<704x128xf32, #tpu.memory_space<vmem>>, vector<32x32xf32>
    %c5 = arith.constant 5 : index
    %c0_41 = arith.constant 0 : index
    %62 = vector.load %arg1[%c5, %c0_41] : memref<8x128xf32, #tpu.memory_space<vmem>>, vector<1x32xf32>
    %c6 = arith.constant 6 : index
    %c0_42 = arith.constant 0 : index
    %63 = vector.load %arg1[%c6, %c0_42] : memref<8x128xf32, #tpu.memory_space<vmem>>, vector<1x32xf32>
    %c7 = arith.constant 7 : index
    %c0_43 = arith.constant 0 : index
    %64 = vector.load %arg1[%c7, %c0_43] : memref<8x128xf32, #tpu.memory_space<vmem>>, vector<1x32xf32>
    %c0_44 = arith.constant 0 : index
    %c0_45 = arith.constant 0 : index
    %65 = vector.load %arg4[%c0_44, %c0_45] : memref<64x6xf32, #tpu.memory_space<vmem>>, vector<64x6xf32>
    %cst_46 = arith.constant dense<0.000000e+00> : vector<64x32xf32>
    %66 = tpu.matmul %65, %59, %cst_46 {dimension_numbers = #tpu.dot_dimension_numbers<[1], [0], [0], [1], [0, 0, 1, 1], [], []>} : vector<64x6xf32>, vector<6x32xf32>, vector<64x32xf32> -> vector<64x32xf32>
    %67 = arith.addf %66, %58 : vector<64x32xf32>
    %68 = vector.broadcast %62 : vector<1x32xf32> to vector<64x32xf32>
    %69 = arith.addf %67, %68 : vector<64x32xf32>
    %cst_47 = arith.constant 0.000000e+00 : f32
    %70 = vector.broadcast %cst_47 : f32 to vector<64x32xf32>
    %71 = arith.cmpf ogt, %69, %70 : vector<64x32xf32>
    %cst_48 = arith.constant 2.000000e-01 : f32
    %72 = vector.broadcast %cst_48 : f32 to vector<64x32xf32>
    %73 = arith.mulf %72, %69 : vector<64x32xf32>
    %74 = arith.select %71, %69, %73 : vector<64x32xi1>, vector<64x32xf32>
    %cst_49 = arith.constant dense<0.000000e+00> : vector<64x32xf32>
    %75 = tpu.matmul %74, %60, %cst_49 {dimension_numbers = #tpu.dot_dimension_numbers<[1], [0], [0], [1], [0, 0, 1, 1], [], []>} : vector<64x32xf32>, vector<32x32xf32>, vector<64x32xf32> -> vector<64x32xf32>
    %76 = vector.broadcast %63 : vector<1x32xf32> to vector<64x32xf32>
    %77 = arith.addf %75, %76 : vector<64x32xf32>
    %cst_50 = arith.constant 0.000000e+00 : f32
    %78 = vector.broadcast %cst_50 : f32 to vector<64x32xf32>
    %79 = arith.cmpf ogt, %77, %78 : vector<64x32xf32>
    %cst_51 = arith.constant 2.000000e-01 : f32
    %80 = vector.broadcast %cst_51 : f32 to vector<64x32xf32>
    %81 = arith.mulf %80, %77 : vector<64x32xf32>
    %82 = arith.select %79, %77, %81 : vector<64x32xi1>, vector<64x32xf32>
    %cst_52 = arith.constant dense<0.000000e+00> : vector<64x32xf32>
    %83 = tpu.matmul %82, %61, %cst_52 {dimension_numbers = #tpu.dot_dimension_numbers<[1], [0], [0], [1], [0, 0, 1, 1], [], []>} : vector<64x32xf32>, vector<32x32xf32>, vector<64x32xf32> -> vector<64x32xf32>
    %84 = vector.broadcast %64 : vector<1x32xf32> to vector<64x32xf32>
    %85 = arith.addf %83, %84 : vector<64x32xf32>
    %cst_53 = arith.constant 0.000000e+00 : f32
    %86 = vector.broadcast %cst_53 : f32 to vector<64x32xf32>
    %87 = arith.cmpf ogt, %85, %86 : vector<64x32xf32>
    %cst_54 = arith.constant 2.000000e-01 : f32
    %88 = vector.broadcast %cst_54 : f32 to vector<64x32xf32>
    %89 = arith.mulf %88, %85 : vector<64x32xf32>
    %90 = arith.select %87, %85, %89 : vector<64x32xi1>, vector<64x32xf32>
    %c0_55 = arith.constant 0 : index
    %c0_56 = arith.constant 0 : index
    %91 = vector.load %arg5[%c0_55, %c0_56] : memref<64x6xf32, #tpu.memory_space<vmem>>, vector<64x6xf32>
    %cst_57 = arith.constant dense<0.000000e+00> : vector<64x32xf32>
    %92 = tpu.matmul %91, %59, %cst_57 {dimension_numbers = #tpu.dot_dimension_numbers<[1], [0], [0], [1], [0, 0, 1, 1], [], []>} : vector<64x6xf32>, vector<6x32xf32>, vector<64x32xf32> -> vector<64x32xf32>
    %93 = arith.addf %92, %58 : vector<64x32xf32>
    %94 = vector.broadcast %62 : vector<1x32xf32> to vector<64x32xf32>
    %95 = arith.addf %93, %94 : vector<64x32xf32>
    %cst_58 = arith.constant 0.000000e+00 : f32
    %96 = vector.broadcast %cst_58 : f32 to vector<64x32xf32>
    %97 = arith.cmpf ogt, %95, %96 : vector<64x32xf32>
    %cst_59 = arith.constant 2.000000e-01 : f32
    %98 = vector.broadcast %cst_59 : f32 to vector<64x32xf32>
    %99 = arith.mulf %98, %95 : vector<64x32xf32>
    %100 = arith.select %97, %95, %99 : vector<64x32xi1>, vector<64x32xf32>
    %cst_60 = arith.constant dense<0.000000e+00> : vector<64x32xf32>
    %101 = tpu.matmul %100, %60, %cst_60 {dimension_numbers = #tpu.dot_dimension_numbers<[1], [0], [0], [1], [0, 0, 1, 1], [], []>} : vector<64x32xf32>, vector<32x32xf32>, vector<64x32xf32> -> vector<64x32xf32>
    %102 = vector.broadcast %63 : vector<1x32xf32> to vector<64x32xf32>
    %103 = arith.addf %101, %102 : vector<64x32xf32>
    %cst_61 = arith.constant 0.000000e+00 : f32
    %104 = vector.broadcast %cst_61 : f32 to vector<64x32xf32>
    %105 = arith.cmpf ogt, %103, %104 : vector<64x32xf32>
    %cst_62 = arith.constant 2.000000e-01 : f32
    %106 = vector.broadcast %cst_62 : f32 to vector<64x32xf32>
    %107 = arith.mulf %106, %103 : vector<64x32xf32>
    %108 = arith.select %105, %103, %107 : vector<64x32xi1>, vector<64x32xf32>
    %cst_63 = arith.constant dense<0.000000e+00> : vector<64x32xf32>
    %109 = tpu.matmul %108, %61, %cst_63 {dimension_numbers = #tpu.dot_dimension_numbers<[1], [0], [0], [1], [0, 0, 1, 1], [], []>} : vector<64x32xf32>, vector<32x32xf32>, vector<64x32xf32> -> vector<64x32xf32>
    %110 = vector.broadcast %64 : vector<1x32xf32> to vector<64x32xf32>
    %111 = arith.addf %109, %110 : vector<64x32xf32>
    %cst_64 = arith.constant 0.000000e+00 : f32
    %112 = vector.broadcast %cst_64 : f32 to vector<64x32xf32>
    %113 = arith.cmpf ogt, %111, %112 : vector<64x32xf32>
    %cst_65 = arith.constant 2.000000e-01 : f32
    %114 = vector.broadcast %cst_65 : f32 to vector<64x32xf32>
    %115 = arith.mulf %114, %111 : vector<64x32xf32>
    %116 = arith.select %113, %111, %115 : vector<64x32xi1>, vector<64x32xf32>
    %117 = arith.subf %90, %116 : vector<64x32xf32>
    %c696 = arith.constant 696 : index
    %c0_66 = arith.constant 0 : index
    %118 = vector.load %arg0[%c696, %c0_66] : memref<704x128xf32, #tpu.memory_space<vmem>>, vector<8x64xf32>
    %cst_67 = arith.constant dense<0.000000e+00> : vector<8x32xf32>
    %119 = tpu.matmul %118, %117, %cst_67 {dimension_numbers = #tpu.dot_dimension_numbers<[1], [0], [0], [1], [0, 0, 1, 1], [], []>} : vector<8x64xf32>, vector<64x32xf32>, vector<8x32xf32> -> vector<8x32xf32>
    %c600 = arith.constant 600 : index
    %c0_68 = arith.constant 0 : index
    %120 = vector.load %arg0[%c600, %c0_68] : memref<704x128xf32, #tpu.memory_space<vmem>>, vector<32x1xf32>
    %cst_69 = arith.constant dense<0.000000e+00> : vector<8x1xf32>
    %121 = tpu.matmul %119, %120, %cst_69 {dimension_numbers = #tpu.dot_dimension_numbers<[1], [0], [0], [1], [0, 0, 1, 1], [], []>} : vector<8x32xf32>, vector<32x1xf32>, vector<8x1xf32> -> vector<8x1xf32>
    %c0_70 = arith.constant 0 : index
    %c0_71 = arith.constant 0 : index
    %122 = vector.load %arg7[%c0_70, %c0_71] : memref<8x1xf32, #tpu.memory_space<vmem>>, vector<8x1xf32>
    %cst_72 = arith.constant 0.000000e+00 : f32
    %123 = vector.broadcast %cst_72 : f32 to vector<8x1xf32>
    %124 = arith.subf %123, %121 : vector<8x1xf32>
    %cst_73 = arith.constant 0.000000e+00 : f32
    %125 = vector.broadcast %cst_73 : f32 to vector<8x1xf32>
    %126 = arith.maximumf %124, %125 : vector<8x1xf32>
    %127 = math.absf %124 : vector<8x1xf32>
    %cst_74 = arith.constant 0.000000e+00 : f32
    %128 = vector.broadcast %cst_74 : f32 to vector<8x1xf32>
    %129 = arith.subf %128, %127 : vector<8x1xf32>
    %130 = math.exp %129 : vector<8x1xf32>
    %cst_75 = arith.constant 1.000000e+00 : f32
    %131 = vector.broadcast %cst_75 : f32 to vector<8x1xf32>
    %132 = arith.addf %131, %130 : vector<8x1xf32>
    %133 = math.log %132 : vector<8x1xf32>
    %134 = arith.addf %126, %133 : vector<8x1xf32>
    %135 = arith.mulf %122, %134 : vector<8x1xf32>
    %cst_76 = arith.constant 1.000000e+00 : f32
    %136 = vector.broadcast %cst_76 : f32 to vector<8x1xf32>
    %137 = arith.subf %136, %122 : vector<8x1xf32>
    %cst_77 = arith.constant 0.000000e+00 : f32
    %138 = vector.broadcast %cst_77 : f32 to vector<8x1xf32>
    %139 = arith.maximumf %121, %138 : vector<8x1xf32>
    %140 = math.absf %121 : vector<8x1xf32>
    %cst_78 = arith.constant 0.000000e+00 : f32
    %141 = vector.broadcast %cst_78 : f32 to vector<8x1xf32>
    %142 = arith.subf %141, %140 : vector<8x1xf32>
    %143 = math.exp %142 : vector<8x1xf32>
    %cst_79 = arith.constant 1.000000e+00 : f32
    %144 = vector.broadcast %cst_79 : f32 to vector<8x1xf32>
    %145 = arith.addf %144, %143 : vector<8x1xf32>
    %146 = math.log %145 : vector<8x1xf32>
    %147 = arith.addf %139, %146 : vector<8x1xf32>
    %148 = arith.mulf %137, %147 : vector<8x1xf32>
    %149 = arith.addf %135, %148 : vector<8x1xf32>
    %150 = vector.shape_cast %149 : vector<8x1xf32> to vector<1x8x1xf32>
    %cst_80 = arith.constant dense<0.000000e+00> : vector<1xf32>
    %151 = vector.multi_reduction <add>, %150, %cst_80 [1, 2] : vector<1x8x1xf32> to vector<1xf32>
    %152 = vector.shape_cast %151 : vector<1xf32> to vector<1x1x1xf32>
    %153 = vector.extract %152[0, 0, 0] : f32 from vector<1x1x1xf32>
    %cst_81 = arith.constant 0.000000e+00 : f32
    %154 = vector.broadcast %cst_81 : f32 to vector<8x1xf32>
    %155 = arith.cmpf ogt, %121, %154 : vector<8x1xf32>
    %156 = arith.extui %155 : vector<8x1xi1> to vector<8x1xi32>
    %157 = arith.sitofp %156 : vector<8x1xi32> to vector<8x1xf32>
    %158 = arith.cmpf oeq, %157, %122 : vector<8x1xf32>
    %159 = arith.extui %158 : vector<8x1xi1> to vector<8x1xi32>
    %160 = arith.sitofp %159 : vector<8x1xi32> to vector<8x1xf32>
    %161 = vector.shape_cast %160 : vector<8x1xf32> to vector<1x8x1xf32>
    %cst_82 = arith.constant dense<0.000000e+00> : vector<1xf32>
    %162 = vector.multi_reduction <add>, %161, %cst_82 [1, 2] : vector<1x8x1xf32> to vector<1xf32>
    %163 = vector.shape_cast %162 : vector<1xf32> to vector<1x1x1xf32>
    %164 = vector.extract %163[0, 0, 0] : f32 from vector<1x1x1xf32>
    %cst_83 = arith.constant 8.000000e+00 : f32
    %165 = arith.divf %164, %cst_83 : f32
    %cst_84 = arith.constant 1.000000e+00 : f32
    %166 = vector.broadcast %cst_84 : f32 to vector<2x8xf32>
    %167 = arith.addf %166, %48 : vector<2x8xf32>
    %168 = arith.mulf %43, %43 : vector<2x8xf32>
    %169 = arith.subf %167, %168 : vector<2x8xf32>
    %170 = math.exp %48 : vector<2x8xf32>
    %171 = arith.subf %169, %170 : vector<2x8xf32>
    %172 = vector.shape_cast %171 : vector<2x8xf32> to vector<1x2x8xf32>
    %cst_85 = arith.constant dense<0.000000e+00> : vector<1xf32>
    %173 = vector.multi_reduction <add>, %172, %cst_85 [1, 2] : vector<1x2x8xf32> to vector<1xf32>
    %174 = vector.shape_cast %173 : vector<1xf32> to vector<1x1x1xf32>
    %175 = vector.extract %174[0, 0, 0] : f32 from vector<1x1x1xf32>
    %cst_86 = arith.constant 0.000000e+00 : f32
    %176 = arith.subf %cst_86, %175 : f32
    %cst_87 = arith.constant 1.000000e+00 : f32
    %177 = arith.mulf %cst_87, %176 : f32
    %178 = arith.addf %153, %177 : f32
    %179 = tpu.iota {dimensions = array<i32: 1>} : vector<1x128xi32>
    %c0_i32 = arith.constant 0 : i32
    %180 = vector.broadcast %c0_i32 : i32 to vector<1x128xi32>
    %181 = arith.cmpi eq, %179, %180 : vector<1x128xi32>
    %cst_88 = arith.constant 0.000000e+00 : f32
    %182 = vector.broadcast %178 : f32 to vector<1x128xf32>
    %183 = vector.broadcast %cst_88 : f32 to vector<1x128xf32>
    %184 = arith.select %181, %182, %183 : vector<1x128xi1>, vector<1x128xf32>
    %c1_i32 = arith.constant 1 : i32
    %185 = vector.broadcast %c1_i32 : i32 to vector<1x128xi32>
    %186 = arith.cmpi eq, %179, %185 : vector<1x128xi32>
    %cst_89 = arith.constant 0.000000e+00 : f32
    %187 = vector.broadcast %153 : f32 to vector<1x128xf32>
    %188 = vector.broadcast %cst_89 : f32 to vector<1x128xf32>
    %189 = arith.select %186, %187, %188 : vector<1x128xi1>, vector<1x128xf32>
    %190 = arith.addf %184, %189 : vector<1x128xf32>
    %c2_i32 = arith.constant 2 : i32
    %191 = vector.broadcast %c2_i32 : i32 to vector<1x128xi32>
    %192 = arith.cmpi eq, %179, %191 : vector<1x128xi32>
    %cst_90 = arith.constant 0.000000e+00 : f32
    %193 = vector.broadcast %176 : f32 to vector<1x128xf32>
    %194 = vector.broadcast %cst_90 : f32 to vector<1x128xf32>
    %195 = arith.select %192, %193, %194 : vector<1x128xi1>, vector<1x128xf32>
    %196 = arith.addf %190, %195 : vector<1x128xf32>
    %c3_i32 = arith.constant 3 : i32
    %197 = vector.broadcast %c3_i32 : i32 to vector<1x128xi32>
    %198 = arith.cmpi eq, %179, %197 : vector<1x128xi32>
    %cst_91 = arith.constant 0.000000e+00 : f32
    %199 = vector.broadcast %165 : f32 to vector<1x128xf32>
    %200 = vector.broadcast %cst_91 : f32 to vector<1x128xf32>
    %201 = arith.select %198, %199, %200 : vector<1x128xi1>, vector<1x128xf32>
    %202 = arith.addf %196, %201 : vector<1x128xf32>
    %c0_92 = arith.constant 0 : index
    %c0_93 = arith.constant 0 : index
    %203 = vector.load %arg9[%c0_92, %c0_93] : memref<1x128xf32, #tpu.memory_space<vmem>>, vector<1x128xf32>
    tpu.vector_store %arg9[%c0_92, %c0_93], %202 {strides = array<i32>} : memref<1x128xf32, #tpu.memory_space<vmem>>, vector<1x128xf32>,
    return
  }
}

</mosaic_0001>

<llo_original>
// kernel: vae_forward.1
$region0: #{vae_forward.1}
  #allocation0 [shape = 'u32[]', space=smem, size = 0x4, offset = 0x4, fixed_abs, tag = 'smem constant byte address 0x4 - core index']
  #allocation1 [shape = 'u32[144,128]{1,0:T(1,128)}', space=vmem, size = 0x12000, scoped, tag = 'internal scratch']
  %s0 = inlined_call_operand.hbm [shape: f32[704,128], index: 0, kind: input, shape index: {}]
  %s1 = inlined_call_operand.vmem [shape: f32[8,128], index: 1, kind: input, shape index: {}]
  %s2 = inlined_call_operand.vmem [shape: f32[2,192], index: 2, kind: input, shape index: {}]
  %s3 = inlined_call_operand.vmem [shape: f32[2,192], index: 3, kind: input, shape index: {}]
  %s4 = inlined_call_operand.vmem [shape: f32[64,6], index: 4, kind: input, shape index: {}]
  %s5 = inlined_call_operand.vmem [shape: f32[64,6], index: 5, kind: input, shape index: {}]
  %s6 = inlined_call_operand.vmem [shape: f32[2,4], index: 6, kind: input, shape index: {}]
  %s7 = inlined_call_operand.vmem [shape: f32[8,1], index: 7, kind: input, shape index: {}]
  %s8 = inlined_call_operand.vmem [shape: f32[2,8], index: 8, kind: input, shape index: {}]
  %s9 = inlined_call_operand.vmem [shape: f32[1,128], index: 9, kind: output, shape index: {}]
  %s10 = sld [smem:[#allocation0]]
  $region50: #{vae_forward.1} parent=0
    _
  %s12 = ssub.s32 1, %s10
  %s13 = scalar_select 0, %s12, %s10
  $region1: #{vae_forward.1} parent=0
    #allocation2 [shape = 'u8[360448]{0}', space=vmem, size = 0x58000, scoped, tag = 'input window, operand 0, single buffered']
    #allocation3 [shape = 's32[1]{0}', space=sflag, size = 0x4, scoped, tag = 'scoped memory for vae_forward.1']
    %14 = vsyncpa [#allocation3], 0
    // Predicated region
    $region2: #{vae_forward.1} parent=1 // pred_check
      _
    $region3: #{vae_forward.1} parent=1 // pred_check_branch
      %16 = sbr.rel (0) target = $region5
    $region4: #{vae_forward.1} parent=1 // pred_region
      %s18 = ssub.s32 11264, 11264
      %19 = vsyncadd [#allocation3], %s18
      %s20 = sshll.u32 [#allocation2], 4
      %s21 = int_to_ptr.vmem [resolvable:$true] %s20
      %26 = dma.hbm_to_vmem [thread:$0]  %s0, 11264, %s21, [#allocation3], 128, 128, 8
    $region5: #{vae_forward.1} parent=1 // pred_fallthru
      _
    // Predicated region
    $region6: #{vae_forward.1} parent=1 // pred_check
      _
    $region7: #{vae_forward.1} parent=1 // pred_check_branch
      %28 = sbr.rel (0) target = $region9
    $region8: #{vae_forward.1} parent=1 // pred_region
      _
    $region9: #{vae_forward.1} parent=1 // pred_fallthru
      _
    // Predicated region
    $region10: #{vae_forward.1} parent=1 // pred_check
      _
    $region11: #{vae_forward.1} parent=1 // pred_check_branch
      %30 = sbr.rel (0) target = $region13
    $region12: #{vae_forward.1} parent=1 // pred_region
      _
    $region13: #{vae_forward.1} parent=1 // pred_fallthru
      _
    // Predicated region
    $region14: #{vae_forward.1} parent=1 // pred_check
      _
    $region15: #{vae_forward.1} parent=1 // pred_check_branch
      %32 = sbr.rel (0) target = $region17
    $region16: #{vae_forward.1} parent=1 // pred_region
      _
    $region17: #{vae_forward.1} parent=1 // pred_fallthru
      _
    // Predicated region
    $region18: #{vae_forward.1} parent=1 // pred_check
      _
    $region19: #{vae_forward.1} parent=1 // pred_check_branch
      %34 = sbr.rel (0) target = $region21
    $region20: #{vae_forward.1} parent=1 // pred_region
      _
    $region21: #{vae_forward.1} parent=1 // pred_fallthru
      _
    // Predicated region
    $region22: #{vae_forward.1} parent=1 // pred_check
      _
    $region23: #{vae_forward.1} parent=1 // pred_check_branch
      %36 = sbr.rel (0) target = $region25
    $region24: #{vae_forward.1} parent=1 // pred_region
      _
    $region25: #{vae_forward.1} parent=1 // pred_fallthru
      _
    // Predicated region
    $region26: #{vae_forward.1} parent=1 // pred_check
      _
    $region27: #{vae_forward.1} parent=1 // pred_check_branch
      %38 = sbr.rel (0) target = $region29
    $region28: #{vae_forward.1} parent=1 // pred_region
      _
    $region29: #{vae_forward.1} parent=1 // pred_fallthru
      _
    // Predicated region
    $region30: #{vae_forward.1} parent=1 // pred_check
      _
    $region31: #{vae_forward.1} parent=1 // pred_check_branch
      %40 = sbr.rel (0) target = $region33
    $region32: #{vae_forward.1} parent=1 // pred_region
      _
    $region33: #{vae_forward.1} parent=1 // pred_fallthru
      _
    // Predicated region
    $region34: #{vae_forward.1} parent=1 // pred_check
      _
    $region35: #{vae_forward.1} parent=1 // pred_check_branch
      %42 = sbr.rel (0) target = $region37
    $region36: #{vae_forward.1} parent=1 // pred_region
      _
    $region37: #{vae_forward.1} parent=1 // pred_fallthru
      _
    // Predicated region
    $region38: #{vae_forward.1} parent=1 // pred_check
      _
    $region39: #{vae_forward.1} parent=1 // pred_check_branch
      %44 = sbr.rel (0) target = $region41
    $region40: #{vae_forward.1} parent=1 // pred_region
      %45 = dma.done [#allocation3], 11264
    $region41: #{vae_forward.1} parent=1 // pred_fallthru
      _
    %v46 = vld [vmem:[%s2] sm:$0xf]
    %v47 = vld [vmem:[#allocation2] sm:$0xff]
    %v48 = vld [vmem:[#allocation2 + $0x8] sm:$0xff]
    %v49 = vld [vmem:[#allocation2 + $0x10] sm:$0xff]
    %v50 = vld [vmem:[#allocation2 + $0x18] sm:$0xff]
    %v51 = vld [vmem:[#allocation2 + $0x20] sm:$0xff]
    %v52 = vld [vmem:[#allocation2 + $0x28] sm:$0xff]
    %v53 = vld [vmem:[#allocation2 + $0x30] sm:$0xff]
    %v54 = vld [vmem:[#allocation2 + $0x38] sm:$0xff]
    %v55 = vld [vmem:[#allocation2 + $0x40] sm:$0xff]
    %v56 = vld [vmem:[#allocation2 + $0x48] sm:$0xff]
    %v57 = vld [vmem:[#allocation2 + $0x50] sm:$0xff]
    %v58 = vld [vmem:[#allocation2 + $0x58] sm:$0xff]
    %v59 = vld [vmem:[#allocation2 + $0x60] sm:$0xff]
    %v60 = vld [vmem:[#allocation2 + $0x68] sm:$0xff]
    %v61 = vld [vmem:[#allocation2 + $0x70] sm:$0xff]
    %v62 = vld [vmem:[#allocation2 + $0x78] sm:$0xff]
    %v63 = vld [vmem:[#allocation2 + $0x80] sm:$0xff]
    %v64 = vld [vmem:[#allocation2 + $0x88] sm:$0xff]
    %v65 = vld [vmem:[#allocation2 + $0x90] sm:$0xff]
    %v66 = vld [vmem:[#allocation2 + $0x98] sm:$0xff]
    %v67 = vld [vmem:[#allocation2 + $0xa0] sm:$0xff]
    %v68 = vld [vmem:[#allocation2 + $0xa8] sm:$0xff]
    %v69 = vld [vmem:[#allocation2 + $0xb0] sm:$0xff]
    %v70 = vld [vmem:[#allocation2 + $0xb8] sm:$0xff]
    %v71 = vld [vmem:[%s3] sm:$0xf]
    %v72 = vld [vmem:[#allocation2 + $0xc0] sm:$0xff]
    %v73 = vld [vmem:[#allocation2 + $0xc8] sm:$0xff]
    %v74 = vld [vmem:[#allocation2 + $0xd0] sm:$0xff]
    %v75 = vld [vmem:[#allocation2 + $0xd8] sm:$0xff]
    %v76 = vld [vmem:[#allocation2 + $0xe0] sm:$0xff]
    %v77 = vld [vmem:[#allocation2 + $0xe8] sm:$0xff]
    %v78 = vld [vmem:[#allocation2 + $0xf0] sm:$0xff]
    %v79 = vld [vmem:[#allocation2 + $0xf8] sm:$0xff]
    %v80 = vld [vmem:[#allocation2 + $0x100] sm:$0xff]
    %v81 = vld [vmem:[#allocation2 + $0x108] sm:$0xff]
    %v82 = vld [vmem:[#allocation2 + $0x110] sm:$0xff]
    %v83 = vld [vmem:[#allocation2 + $0x118] sm:$0xff]
    %v84 = vld [vmem:[#allocation2 + $0x120] sm:$0xff]
    %v85 = vld [vmem:[#allocation2 + $0x128] sm:$0xff]
    %v86 = vld [vmem:[#allocation2 + $0x130] sm:$0xff]
    %v87 = vld [vmem:[#allocation2 + $0x138] sm:$0xff]
    %v88 = vld [vmem:[#allocation2 + $0x140] sm:$0xff]
    %v89 = vld [vmem:[#allocation2 + $0x148] sm:$0xff]
    %v90 = vld [vmem:[#allocation2 + $0x150] sm:$0xff]
    %v91 = vld [vmem:[#allocation2 + $0x158] sm:$0xff]
    %v92 = vld [vmem:[#allocation2 + $0x160] sm:$0xff]
    %v93 = vld [vmem:[#allocation2 + $0x168] sm:$0xff]
    %v94 = vld [vmem:[#allocation2 + $0x170] sm:$0xff]
    %v95 = vld [vmem:[#allocation2 + $0x178] sm:$0xff]
    %v98 = vunpack.c.l.s4 1983009808
    %v99 = vunpack.c.0.s8 %v98
    %v100 = vlaneseq
    %v101 = vshrl.u32 %v100, 7
    %v102 = vsub.s32 %v99, %v101
    %v103 = vrot.slane %v71, %v102
    %v104 = vcombine.high %v103, %v103
    %vm106 = vcmask 523264
    %v107 = vsel %vm106, %v104, 0
    %109 = vmatprep.subr.mxu0 0.0
    %110 = vmatpush1.msra.mxu0 %v72
    %111 = vmatprep.subr.mxu0 0.0
    %112 = vmatpush1.msra.mxu0 %v73
    %113 = vmatprep.subr.mxu0 0.0
    %114 = vmatpush1.msra.mxu0 %v74
    %115 = vmatprep.subr.mxu0 0.0
    %116 = vmatpush1.msra.mxu0 %v75
    %117 = vmatprep.subr.mxu0 0.0
    %118 = vmatpush1.msra.mxu0 %v76
    %119 = vmatprep.subr.mxu0 0.0
    %120 = vmatpush1.msra.mxu0 %v77
    %121 = vmatprep.subr.mxu0 0.0
    %122 = vmatpush1.msra.mxu0 %v78
    %123 = vmatprep.subr.mxu0 0.0
    %124 = vmatpush1.msra.mxu0 %v79
    %125 = vmatprep.subr.mxu0 0.0
    %126 = vmatpush1.msra.mxu0 %v80
    %127 = vmatprep.subr.mxu0 0.0
    %128 = vmatpush1.msra.mxu0 %v81
    %129 = vmatprep.subr.mxu0 0.0
    %130 = vmatpush1.msra.mxu0 %v82
    %131 = vmatprep.subr.mxu0 0.0
    %132 = vmatpush1.msra.mxu0 %v83
    %133 = vmatprep.subr.mxu0 0.0
    %134 = vmatpush1.msra.mxu0 %v84
    %135 = vmatprep.subr.mxu0 0.0
    %136 = vmatpush1.msra.mxu0 %v85
    %137 = vmatprep.subr.mxu0 0.0
    %138 = vmatpush1.msra.mxu0 %v86
    %139 = vmatprep.subr.mxu0 0.0
    %140 = vmatpush1.msra.mxu0 %v87
    %141 = vmatprep.subr.mxu0 0.0
    %142 = vmatpush1.msra.mxu0 %v88
    %143 = vmatprep.subr.mxu0 0.0
    %144 = vmatpush1.msra.mxu0 %v89
    %145 = vmatprep.subr.mxu0 0.0
    %146 = vmatpush1.msra.mxu0 %v90
    %147 = vmatprep.subr.mxu0 0.0
    %148 = vmatpush1.msra.mxu0 %v91
    %149 = vmatprep.subr.mxu0 0.0
    %150 = vmatpush1.msra.mxu0 %v92
    %151 = vmatprep.subr.mxu0 0.0
    %152 = vmatpush1.msra.mxu0 %v93
    %153 = vmatprep.subr.mxu0 0.0
    %154 = vmatpush1.msra.mxu0 %v94
    %155 = vmatprep.subr.mxu0 0.0
    %156 = vmatpush1.msra.mxu0 %v95
    %157 = vmatprep.subr.mxu0 0.0
    %158 = vmatpush1.msra.mxu0 0.0
    %159 = vmatprep.subr.mxu0 0.0
    %160 = vmatpush1.msra.mxu0 0.0
    %161 = vmatprep.subr.mxu0 0.0
    %162 = vmatpush1.msra.mxu0 0.0
    %163 = vmatprep.subr.mxu0 0.0
    %164 = vmatpush1.msra.mxu0 0.0
    %165 = vmatprep.subr.mxu0 0.0
    %166 = vmatpush1.msra.mxu0 0.0
    %167 = vmatprep.subr.mxu0 0.0
    %168 = vmatpush1.msra.mxu0 0.0
    %169 = vmatprep.subr.mxu0 0.0
    %170 = vmatpush1.msra.mxu0 0.0
    %171 = vmatprep.subr.mxu0 0.0
    %172 = vmatpush1.msra.mxu0 0.0
    %173 = vmatprep.mubr.f32.mxu0 %v107
    %174 = vmatmul.mubr.f32.gmra.mrb[0].mxu0 %v103
    %v175 = vpop.f32.mrb[0].mxu0
    %v176 = vadd.f32 0.0, %v175
    %v177 = vpop.f32.mrb[0].mxu0
    %178 = vdwg.mxu0
    %v181 = vunpack.c.l.s4 1983009808
    %v182 = vunpack.c.0.s8 %v181
    %v183 = vlaneseq
    %v184 = vshrl.u32 %v183, 7
    %v185 = vsub.s32 %v182, %v184
    %v186 = vrot.slane %v46, %v185
    %v187 = vcombine.high %v186, %v186
    %v189 = vsel %vm106, %v187, 0
    %191 = vmatprep.subr.mxu0 0.0
    %192 = vmatpush1.msra.mxu0 %v47
    %193 = vmatprep.subr.mxu0 0.0
    %194 = vmatpush1.msra.mxu0 %v48
    %195 = vmatprep.subr.mxu0 0.0
    %196 = vmatpush1.msra.mxu0 %v49
    %197 = vmatprep.subr.mxu0 0.0
    %198 = vmatpush1.msra.mxu0 %v50
    %199 = vmatprep.subr.mxu0 0.0
    %200 = vmatpush1.msra.mxu0 %v51
    %201 = vmatprep.subr.mxu0 0.0
    %202 = vmatpush1.msra.mxu0 %v52
    %203 = vmatprep.subr.mxu0 0.0
    %204 = vmatpush1.msra.mxu0 %v53
    %205 = vmatprep.subr.mxu0 0.0
    %206 = vmatpush1.msra.mxu0 %v54
    %207 = vmatprep.subr.mxu0 0.0
    %208 = vmatpush1.msra.mxu0 %v55
    %209 = vmatprep.subr.mxu0 0.0
    %210 = vmatpush1.msra.mxu0 %v56
    %211 = vmatprep.subr.mxu0 0.0
    %212 = vmatpush1.msra.mxu0 %v57
    %213 = vmatprep.subr.mxu0 0.0
    %214 = vmatpush1.msra.mxu0 %v58
    %215 = vmatprep.subr.mxu0 0.0
    %216 = vmatpush1.msra.mxu0 %v59
    %217 = vmatprep.subr.mxu0 0.0
    %218 = vmatpush1.msra.mxu0 %v60
    %219 = vmatprep.subr.mxu0 0.0
    %220 = vmatpush1.msra.mxu0 %v61
    %221 = vmatprep.subr.mxu0 0.0
    %222 = vmatpush1.msra.mxu0 %v62
    %223 = vmatprep.subr.mxu0 0.0
    %224 = vmatpush1.msra.mxu0 %v63
    %225 = vmatprep.subr.mxu0 0.0
    %226 = vmatpush1.msra.mxu0 %v64
    %227 = vmatprep.subr.mxu0 0.0
    %228 = vmatpush1.msra.mxu0 %v65
    %229 = vmatprep.subr.mxu0 0.0
    %230 = vmatpush1.msra.mxu0 %v66
    %231 = vmatprep.subr.mxu0 0.0
    %232 = vmatpush1.msra.mxu0 %v67
    %233 = vmatprep.subr.mxu0 0.0
    %234 = vmatpush1.msra.mxu0 %v68
    %235 = vmatprep.subr.mxu0 0.0
    %236 = vmatpush1.msra.mxu0 %v69
    %237 = vmatprep.subr.mxu0 0.0
    %238 = vmatpush1.msra.mxu0 %v70
    %239 = vmatprep.subr.mxu0 0.0
    %240 = vmatpush1.msra.mxu0 0.0
    %241 = vmatprep.subr.mxu0 0.0
    %242 = vmatpush1.msra.mxu0 0.0
    %243 = vmatprep.subr.mxu0 0.0
    %244 = vmatpush1.msra.mxu0 0.0
    %245 = vmatprep.subr.mxu0 0.0
    %246 = vmatpush1.msra.mxu0 0.0
    %247 = vmatprep.subr.mxu0 0.0
    %248 = vmatpush1.msra.mxu0 0.0
    %249 = vmatprep.subr.mxu0 0.0
    %250 = vmatpush1.msra.mxu0 0.0
    %251 = vmatprep.subr.mxu0 0.0
    %252 = vmatpush1.msra.mxu0 0.0
    %253 = vmatprep.subr.mxu0 0.0
    %254 = vmatpush1.msra.mxu0 0.0
    %255 = vmatprep.mubr.f32.mxu0 %v189
    %256 = vmatmul.mubr.f32.gmra.mrb[0].mxu0 %v186
    %v257 = vpop.f32.mrb[0].mxu0
    %v258 = vadd.f32 %v176, %v257
    %v259 = vpop.f32.mrb[0].mxu0
    %260 = vdwg.mxu0
    %v261 = vld [vmem:[%s6] sm:$0x3]
    %v262 = vld [vmem:[#allocation2 + $0x180] sm:$0xf]
    %vm263 = vcmask 31744
    %v265 = vsel %vm263, %v261, 0
    %vm267 = vcmask 1043456
    %v269 = vsel %vm267, %v262, 0
    %271 = vmatprep.subr.mxu0 0.0
    %272 = vmatpush1.msra.mxu0 %v269
    %273 = vmatprep.subr.mxu0 0.0
    %274 = vmatpush1.msra.mxu0 0.0
    %275 = vmatprep.subr.mxu0 0.0
    %276 = vmatpush1.msra.mxu0 0.0
    %277 = vmatprep.subr.mxu0 0.0
    %278 = vmatpush1.msra.mxu0 0.0
    %279 = vmatprep.subr.mxu0 0.0
    %280 = vmatpush1.msra.mxu0 0.0
    %281 = vmatprep.subr.mxu0 0.0
    %282 = vmatpush1.msra.mxu0 0.0
    %283 = vmatprep.subr.mxu0 0.0
    %284 = vmatpush1.msra.mxu0 0.0
    %285 = vmatprep.subr.mxu0 0.0
    %286 = vmatpush1.msra.mxu0 0.0
    %287 = vmatprep.subr.mxu0 0.0
    %288 = vmatpush1.msra.mxu0 0.0
    %289 = vmatprep.subr.mxu0 0.0
    %290 = vmatpush1.msra.mxu0 0.0
    %291 = vmatprep.subr.mxu0 0.0
    %292 = vmatpush1.msra.mxu0 0.0
    %293 = vmatprep.subr.mxu0 0.0
    %294 = vmatpush1.msra.mxu0 0.0
    %295 = vmatprep.subr.mxu0 0.0
    %296 = vmatpush1.msra.mxu0 0.0
    %297 = vmatprep.subr.mxu0 0.0
    %298 = vmatpush1.msra.mxu0 0.0
    %299 = vmatprep.subr.mxu0 0.0
    %300 = vmatpush1.msra.mxu0 0.0
    %301 = vmatprep.subr.mxu0 0.0
    %302 = vmatpush1.msra.mxu0 0.0
    %303 = vmatprep.subr.mxu0 0.0
    %304 = vmatpush1.msra.mxu0 0.0
    %305 = vmatprep.subr.mxu0 0.0
    %306 = vmatpush1.msra.mxu0 0.0
    %307 = vmatprep.subr.mxu0 0.0
    %308 = vmatpush1.msra.mxu0 0.0
    %309 = vmatprep.subr.mxu0 0.0
    %310 = vmatpush1.msra.mxu0 0.0
    %311 = vmatprep.subr.mxu0 0.0
    %312 = vmatpush1.msra.mxu0 0.0
    %313 = vmatprep.subr.mxu0 0.0
    %314 = vmatpush1.msra.mxu0 0.0
    %315 = vmatprep.subr.mxu0 0.0
    %316 = vmatpush1.msra.mxu0 0.0
    %317 = vmatprep.subr.mxu0 0.0
    %318 = vmatpush1.msra.mxu0 0.0
    %319 = vmatprep.subr.mxu0 0.0
    %320 = vmatpush1.msra.mxu0 0.0
    %321 = vmatprep.subr.mxu0 0.0
    %322 = vmatpush1.msra.mxu0 0.0
    %323 = vmatprep.subr.mxu0 0.0
    %324 = vmatpush1.msra.mxu0 0.0
    %325 = vmatprep.subr.mxu0 0.0
    %326 = vmatpush1.msra.mxu0 0.0
    %327 = vmatprep.subr.mxu0 0.0
    %328 = vmatpush1.msra.mxu0 0.0
    %329 = vmatprep.subr.mxu0 0.0
    %330 = vmatpush1.msra.mxu0 0.0
    %331 = vmatprep.subr.mxu0 0.0
    %332 = vmatpush1.msra.mxu0 0.0
    %333 = vmatprep.subr.mxu0 0.0
    %334 = vmatpush1.msra.mxu0 0.0
    %335 = vmatprep.mubr.f32.mxu0 0.0
    %336 = vmatmul.mubr.f32.gmra.mrb[0].mxu0 %v265
    %v337 = vpop.f32.mrb[0].mxu0
    %v338 = vadd.f32 0.0, %v337
    %v339 = vpop.f32.mrb[0].mxu0
    %340 = vdwg.mxu0
    %v341 = vadd.f32 %v258, %v338
    %v342 = vld [vmem:[%s1] sm:$0x1]
    %v343 = vlaneseq
    %v344 = vshrl.u32 %v343, 7
    %v345 = vsub.s32 0, %v344
    %v346 = vrot.slane %v342, %v345
    %v347 = vadd.f32 %v341, %v346
    %vm348 = vcmp.gt.f32.partialorder %v347, 0.0
    %v349 = vmul.f32 %v347, 0.2
    %v350 = vsel %vm348, %v347, %v349
    %v351 = vld [vmem:[#allocation2 + $0x188] sm:$0xff]
    %v352 = vld [vmem:[#allocation2 + $0x190] sm:$0xff]
    %v353 = vld [vmem:[#allocation2 + $0x198] sm:$0xff]
    %v354 = vld [vmem:[#allocation2 + $0x1a0] sm:$0xff]
    %v355 = vld [vmem:[%s1 + $0x1] sm:$0x1]
    %v356 = vlaneseq
    %v357 = vshrl.u32 %v356, 7
    %v358 = vsub.s32 0, %v357
    %v359 = vrot.slane %v355, %v358
    %vm360 = vcmask 261120
    %v362 = vsel %vm360, %v350, 0
    %364 = vmatprep.subr.mxu0 0.0
    %365 = vmatpush1.msra.mxu0 %v351
    %366 = vmatprep.subr.mxu0 0.0
    %367 = vmatpush1.msra.mxu0 %v352
    %368 = vmatprep.subr.mxu0 0.0
    %369 = vmatpush1.msra.mxu0 %v353
    %370 = vmatprep.subr.mxu0 0.0
    %371 = vmatpush1.msra.mxu0 %v354
    %372 = vmatprep.subr.mxu0 0.0
    %373 = vmatpush1.msra.mxu0 0.0
    %374 = vmatprep.subr.mxu0 0.0
    %375 = vmatpush1.msra.mxu0 0.0
    %376 = vmatprep.subr.mxu0 0.0
    %377 = vmatpush1.msra.mxu0 0.0
    %378 = vmatprep.subr.mxu0 0.0
    %379 = vmatpush1.msra.mxu0 0.0
    %380 = vmatprep.subr.mxu0 0.0
    %381 = vmatpush1.msra.mxu0 0.0
    %382 = vmatprep.subr.mxu0 0.0
    %383 = vmatpush1.msra.mxu0 0.0
    %384 = vmatprep.subr.mxu0 0.0
    %385 = vmatpush1.msra.mxu0 0.0
    %386 = vmatprep.subr.mxu0 0.0
    %387 = vmatpush1.msra.mxu0 0.0
    %388 = vmatprep.subr.mxu0 0.0
    %389 = vmatpush1.msra.mxu0 0.0
    %390 = vmatprep.subr.mxu0 0.0
    %391 = vmatpush1.msra.mxu0 0.0
    %392 = vmatprep.subr.mxu0 0.0
    %393 = vmatpush1.msra.mxu0 0.0
    %394 = vmatprep.subr.mxu0 0.0
    %395 = vmatpush1.msra.mxu0 0.0
    %396 = vmatprep.subr.mxu0 0.0
    %397 = vmatpush1.msra.mxu0 0.0
    %398 = vmatprep.subr.mxu0 0.0
    %399 = vmatpush1.msra.mxu0 0.0
    %400 = vmatprep.subr.mxu0 0.0
    %401 = vmatpush1.msra.mxu0 0.0
    %402 = vmatprep.subr.mxu0 0.0
    %403 = vmatpush1.msra.mxu0 0.0
    %404 = vmatprep.subr.mxu0 0.0
    %405 = vmatpush1.msra.mxu0 0.0
    %406 = vmatprep.subr.mxu0 0.0
    %407 = vmatpush1.msra.mxu0 0.0
    %408 = vmatprep.subr.mxu0 0.0
    %409 = vmatpush1.msra.mxu0 0.0
    %410 = vmatprep.subr.mxu0 0.0
    %411 = vmatpush1.msra.mxu0 0.0
    %412 = vmatprep.subr.mxu0 0.0
    %413 = vmatpush1.msra.mxu0 0.0
    %414 = vmatprep.subr.mxu0 0.0
    %415 = vmatpush1.msra.mxu0 0.0
    %416 = vmatprep.subr.mxu0 0.0
    %417 = vmatpush1.msra.mxu0 0.0
    %418 = vmatprep.subr.mxu0 0.0
    %419 = vmatpush1.msra.mxu0 0.0
    %420 = vmatprep.subr.mxu0 0.0
    %421 = vmatpush1.msra.mxu0 0.0
    %422 = vmatprep.subr.mxu0 0.0
    %423 = vmatpush1.msra.mxu0 0.0
    %424 = vmatprep.subr.mxu0 0.0
    %425 = vmatpush1.msra.mxu0 0.0
    %426 = vmatprep.subr.mxu0 0.0
    %427 = vmatpush1.msra.mxu0 0.0
    %428 = vmatprep.mubr.f32.mxu0 0.0
    %429 = vmatmul.mubr.f32.gmra.mrb[0].mxu0 %v362
    %v430 = vpop.f32.mrb[0].mxu0
    %v431 = vadd.f32 %v359, %v430
    %v432 = vpop.f32.mrb[0].mxu0
    %433 = vdwg.mxu0
    %vm434 = vcmp.gt.f32.partialorder %v431, 0.0
    %v435 = vmul.f32 %v431, 0.2
    %v436 = vsel %vm434, %v431, %v435
    %v437 = vld [vmem:[#allocation2 + $0x1a8] sm:$0xff]
    %v438 = vld [vmem:[#allocation2 + $0x1b0] sm:$0xff]
    %v439 = vld [vmem:[#allocation2 + $0x1b8] sm:$0xff]
    %v440 = vld [vmem:[#allocation2 + $0x1c0] sm:$0xff]
    %v441 = vld [vmem:[%s1 + $0x2] sm:$0x1]
    %v442 = vlaneseq
    %v443 = vshrl.u32 %v442, 7
    %v444 = vsub.s32 0, %v443
    %v445 = vrot.slane %v441, %v444
    %v447 = vsel %vm360, %v436, 0
    %449 = vmatprep.subr.mxu0 0.0
    %450 = vmatpush1.msra.mxu0 %v437
    %451 = vmatprep.subr.mxu0 0.0
    %452 = vmatpush1.msra.mxu0 %v438
    %453 = vmatprep.subr.mxu0 0.0
    %454 = vmatpush1.msra.mxu0 %v439
    %455 = vmatprep.subr.mxu0 0.0
    %456 = vmatpush1.msra.mxu0 %v440
    %457 = vmatprep.subr.mxu0 0.0
    %458 = vmatpush1.msra.mxu0 0.0
    %459 = vmatprep.subr.mxu0 0.0
    %460 = vmatpush1.msra.mxu0 0.0
    %461 = vmatprep.subr.mxu0 0.0
    %462 = vmatpush1.msra.mxu0 0.0
    %463 = vmatprep.subr.mxu0 0.0
    %464 = vmatpush1.msra.mxu0 0.0
    %465 = vmatprep.subr.mxu0 0.0
    %466 = vmatpush1.msra.mxu0 0.0
    %467 = vmatprep.subr.mxu0 0.0
    %468 = vmatpush1.msra.mxu0 0.0
    %469 = vmatprep.subr.mxu0 0.0
    %470 = vmatpush1.msra.mxu0 0.0
    %471 = vmatprep.subr.mxu0 0.0
    %472 = vmatpush1.msra.mxu0 0.0
    %473 = vmatprep.subr.mxu0 0.0
    %474 = vmatpush1.msra.mxu0 0.0
    %475 = vmatprep.subr.mxu0 0.0
    %476 = vmatpush1.msra.mxu0 0.0
    %477 = vmatprep.subr.mxu0 0.0
    %478 = vmatpush1.msra.mxu0 0.0
    %479 = vmatprep.subr.mxu0 0.0
    %480 = vmatpush1.msra.mxu0 0.0
    %481 = vmatprep.subr.mxu0 0.0
    %482 = vmatpush1.msra.mxu0 0.0
    %483 = vmatprep.subr.mxu0 0.0
    %484 = vmatpush1.msra.mxu0 0.0
    %485 = vmatprep.subr.mxu0 0.0
    %486 = vmatpush1.msra.mxu0 0.0
    %487 = vmatprep.subr.mxu0 0.0
    %488 = vmatpush1.msra.mxu0 0.0
    %489 = vmatprep.subr.mxu0 0.0
    %490 = vmatpush1.msra.mxu0 0.0
    %491 = vmatprep.subr.mxu0 0.0
    %492 = vmatpush1.msra.mxu0 0.0
    %493 = vmatprep.subr.mxu0 0.0
    %494 = vmatpush1.msra.mxu0 0.0
    %495 = vmatprep.subr.mxu0 0.0
    %496 = vmatpush1.msra.mxu0 0.0
    %497 = vmatprep.subr.mxu0 0.0
    %498 = vmatpush1.msra.mxu0 0.0
    %499 = vmatprep.subr.mxu0 0.0
    %500 = vmatpush1.msra.mxu0 0.0
    %501 = vmatprep.subr.mxu0 0.0
    %502 = vmatpush1.msra.mxu0 0.0
    %503 = vmatprep.subr.mxu0 0.0
    %504 = vmatpush1.msra.mxu0 0.0
    %505 = vmatprep.subr.mxu0 0.0
    %506 = vmatpush1.msra.mxu0 0.0
    %507 = vmatprep.subr.mxu0 0.0
    %508 = vmatpush1.msra.mxu0 0.0
    %509 = vmatprep.subr.mxu0 0.0
    %510 = vmatpush1.msra.mxu0 0.0
    %511 = vmatprep.subr.mxu0 0.0
    %512 = vmatpush1.msra.mxu0 0.0
    %513 = vmatprep.mubr.f32.mxu0 0.0
    %514 = vmatmul.mubr.f32.gmra.mrb[0].mxu0 %v447
    %v515 = vpop.f32.mrb[0].mxu0
    %v516 = vadd.f32 %v445, %v515
    %v517 = vpop.f32.mrb[0].mxu0
    %518 = vdwg.mxu0
    %vm519 = vcmp.gt.f32.partialorder %v516, 0.0
    %v520 = vmul.f32 %v516, 0.2
    %v521 = vsel %vm519, %v516, %v520
    %v522 = vld [vmem:[#allocation2 + $0x1c8] sm:$0xff]
    %v523 = vld [vmem:[#allocation2 + $0x1d0] sm:$0xff]
    %v524 = vld [vmem:[#allocation2 + $0x1d8] sm:$0xff]
    %v525 = vld [vmem:[#allocation2 + $0x1e0] sm:$0xff]
    %v526 = vld [vmem:[%s1 + $0x3] sm:$0x1]
    %v527 = vlaneseq
    %v528 = vshrl.u32 %v527, 7
    %v529 = vsub.s32 0, %v528
    %v530 = vrot.slane %v526, %v529
    %v532 = vsel %vm360, %v521, 0
    %534 = vmatprep.subr.mxu0 0.0
    %535 = vmatpush1.msra.mxu0 %v522
    %536 = vmatprep.subr.mxu0 0.0
    %537 = vmatpush1.msra.mxu0 %v523
    %538 = vmatprep.subr.mxu0 0.0
    %539 = vmatpush1.msra.mxu0 %v524
    %540 = vmatprep.subr.mxu0 0.0
    %541 = vmatpush1.msra.mxu0 %v525
    %542 = vmatprep.subr.mxu0 0.0
    %543 = vmatpush1.msra.mxu0 0.0
    %544 = vmatprep.subr.mxu0 0.0
    %545 = vmatpush1.msra.mxu0 0.0
    %546 = vmatprep.subr.mxu0 0.0
    %547 = vmatpush1.msra.mxu0 0.0
    %548 = vmatprep.subr.mxu0 0.0
    %549 = vmatpush1.msra.mxu0 0.0
    %550 = vmatprep.subr.mxu0 0.0
    %551 = vmatpush1.msra.mxu0 0.0
    %552 = vmatprep.subr.mxu0 0.0
    %553 = vmatpush1.msra.mxu0 0.0
    %554 = vmatprep.subr.mxu0 0.0
    %555 = vmatpush1.msra.mxu0 0.0
    %556 = vmatprep.subr.mxu0 0.0
    %557 = vmatpush1.msra.mxu0 0.0
    %558 = vmatprep.subr.mxu0 0.0
    %559 = vmatpush1.msra.mxu0 0.0
    %560 = vmatprep.subr.mxu0 0.0
    %561 = vmatpush1.msra.mxu0 0.0
    %562 = vmatprep.subr.mxu0 0.0
    %563 = vmatpush1.msra.mxu0 0.0
    %564 = vmatprep.subr.mxu0 0.0
    %565 = vmatpush1.msra.mxu0 0.0
    %566 = vmatprep.subr.mxu0 0.0
    %567 = vmatpush1.msra.mxu0 0.0
    %568 = vmatprep.subr.mxu0 0.0
    %569 = vmatpush1.msra.mxu0 0.0
    %570 = vmatprep.subr.mxu0 0.0
    %571 = vmatpush1.msra.mxu0 0.0
    %572 = vmatprep.subr.mxu0 0.0
    %573 = vmatpush1.msra.mxu0 0.0
    %574 = vmatprep.subr.mxu0 0.0
    %575 = vmatpush1.msra.mxu0 0.0
    %576 = vmatprep.subr.mxu0 0.0
    %577 = vmatpush1.msra.mxu0 0.0
    %578 = vmatprep.subr.mxu0 0.0
    %579 = vmatpush1.msra.mxu0 0.0
    %580 = vmatprep.subr.mxu0 0.0
    %581 = vmatpush1.msra.mxu0 0.0
    %582 = vmatprep.subr.mxu0 0.0
    %583 = vmatpush1.msra.mxu0 0.0
    %584 = vmatprep.subr.mxu0 0.0
    %585 = vmatpush1.msra.mxu0 0.0
    %586 = vmatprep.subr.mxu0 0.0
    %587 = vmatpush1.msra.mxu0 0.0
    %588 = vmatprep.subr.mxu0 0.0
    %589 = vmatpush1.msra.mxu0 0.0
    %590 = vmatprep.subr.mxu0 0.0
    %591 = vmatpush1.msra.mxu0 0.0
    %592 = vmatprep.subr.mxu0 0.0
    %593 = vmatpush1.msra.mxu0 0.0
    %594 = vmatprep.subr.mxu0 0.0
    %595 = vmatpush1.msra.mxu0 0.0
    %596 = vmatprep.subr.mxu0 0.0
    %597 = vmatpush1.msra.mxu0 0.0
    %598 = vmatprep.mubr.f32.mxu0 0.0
    %599 = vmatmul.mubr.f32.gmra.mrb[0].mxu0 %v532
    %v600 = vpop.f32.mrb[0].mxu0
    %v601 = vadd.f32 %v530, %v600
    %v602 = vpop.f32.mrb[0].mxu0
    %603 = vdwg.mxu0
    %v604 = vld [vmem:[#allocation2 + $0x1e8] sm:$0xff]
    %v605 = vld [vmem:[#allocation2 + $0x1f0] sm:$0xff]
    %v606 = vld [vmem:[#allocation2 + $0x1f8] sm:$0xff]
    %v607 = vld [vmem:[#allocation2 + $0x200] sm:$0xff]
    %v608 = vld [vmem:[%s1 + $0x4] sm:$0x1]
    %v609 = vlaneseq
    %v610 = vshrl.u32 %v609, 7
    %v611 = vsub.s32 0, %v610
    %v612 = vrot.slane %v608, %v611
    %613 = vmatprep.subr.mxu0 0.0
    %614 = vmatpush1.msra.mxu0 %v604
    %615 = vmatprep.subr.mxu0 0.0
    %616 = vmatpush1.msra.mxu0 %v605
    %617 = vmatprep.subr.mxu0 0.0
    %618 = vmatpush1.msra.mxu0 %v606
    %619 = vmatprep.subr.mxu0 0.0
    %620 = vmatpush1.msra.mxu0 %v607
    %621 = vmatprep.subr.mxu0 0.0
    %622 = vmatpush1.msra.mxu0 0.0
    %623 = vmatprep.subr.mxu0 0.0
    %624 = vmatpush1.msra.mxu0 0.0
    %625 = vmatprep.subr.mxu0 0.0
    %626 = vmatpush1.msra.mxu0 0.0
    %627 = vmatprep.subr.mxu0 0.0
    %628 = vmatpush1.msra.mxu0 0.0
    %629 = vmatprep.subr.mxu0 0.0
    %630 = vmatpush1.msra.mxu0 0.0
    %631 = vmatprep.subr.mxu0 0.0
    %632 = vmatpush1.msra.mxu0 0.0
    %633 = vmatprep.subr.mxu0 0.0
    %634 = vmatpush1.msra.mxu0 0.0
    %635 = vmatprep.subr.mxu0 0.0
    %636 = vmatpush1.msra.mxu0 0.0
    %637 = vmatprep.subr.mxu0 0.0
    %638 = vmatpush1.msra.mxu0 0.0
    %639 = vmatprep.subr.mxu0 0.0
    %640 = vmatpush1.msra.mxu0 0.0
    %641 = vmatprep.subr.mxu0 0.0
    %642 = vmatpush1.msra.mxu0 0.0
    %643 = vmatprep.subr.mxu0 0.0
    %644 = vmatpush1.msra.mxu0 0.0
    %645 = vmatprep.subr.mxu0 0.0
    %646 = vmatpush1.msra.mxu0 0.0
    %647 = vmatprep.subr.mxu0 0.0
    %648 = vmatpush1.msra.mxu0 0.0
    %649 = vmatprep.subr.mxu0 0.0
    %650 = vmatpush1.msra.mxu0 0.0
    %651 = vmatprep.subr.mxu0 0.0
    %652 = vmatpush1.msra.mxu0 0.0
    %653 = vmatprep.subr.mxu0 0.0
    %654 = vmatpush1.msra.mxu0 0.0
    %655 = vmatprep.subr.mxu0 0.0
    %656 = vmatpush1.msra.mxu0 0.0
    %657 = vmatprep.subr.mxu0 0.0
    %658 = vmatpush1.msra.mxu0 0.0
    %659 = vmatprep.subr.mxu0 0.0
    %660 = vmatpush1.msra.mxu0 0.0
    %661 = vmatprep.subr.mxu0 0.0
    %662 = vmatpush1.msra.mxu0 0.0
    %663 = vmatprep.subr.mxu0 0.0
    %664 = vmatpush1.msra.mxu0 0.0
    %665 = vmatprep.subr.mxu0 0.0
    %666 = vmatpush1.msra.mxu0 0.0
    %667 = vmatprep.subr.mxu0 0.0
    %668 = vmatpush1.msra.mxu0 0.0
    %669 = vmatprep.subr.mxu0 0.0
    %670 = vmatpush1.msra.mxu0 0.0
    %671 = vmatprep.subr.mxu0 0.0
    %672 = vmatpush1.msra.mxu0 0.0
    %673 = vmatprep.subr.mxu0 0.0
    %674 = vmatpush1.msra.mxu0 0.0
    %675 = vmatprep.subr.mxu0 0.0
    %676 = vmatpush1.msra.mxu0 0.0
    %677 = vmatprep.mubr.f32.mxu0 0.0
    %678 = vmatmul.mubr.f32.gmra.mrb[0].mxu0 %v532
    %v679 = vpop.f32.mrb[0].mxu0
    %v680 = vadd.f32 %v612, %v679
    %v681 = vpop.f32.mrb[0].mxu0
    %682 = vdwg.mxu0
    %v683 = vmul.f32 %v680, 0.5
    %v684 = vmul.f32 %v683, 1.442695
    %v685 = vpow.pop %v684
    %v686 = vld [vmem:[%s8] sm:$0x3]
    %v687 = vmul.f32 %v685, %v686
    %v688 = vadd.f32 %v601, %v687
    %v689 = vld [vmem:[#allocation2 + $0x278] sm:$0xff]
    %v690 = vld [vmem:[#allocation2 + $0x280] sm:$0xff]
    %v691 = vld [vmem:[#allocation2 + $0x288] sm:$0xff]
    %v692 = vld [vmem:[#allocation2 + $0x290] sm:$0xff]
    %v693 = vld [vmem:[#allocation2 + $0x298] sm:$0xff]
    %v694 = vld [vmem:[#allocation2 + $0x2a0] sm:$0xff]
    %v695 = vld [vmem:[#allocation2 + $0x2a8] sm:$0xff]
    %v696 = vld [vmem:[#allocation2 + $0x2b0] sm:$0xff]
    %v697 = vld [vmem:[#allocation2 + $0x210] sm:$0xff]
    %vm698 = vcmask 64512
    %v700 = vsel %vm698, %v688, 0
    %702 = vmatprep.subr.mxu0 0.0
    %703 = vmatpush1.msra.mxu0 %v697
    %704 = vmatprep.subr.mxu0 0.0
    %705 = vmatpush1.msra.mxu0 0.0
    %706 = vmatprep.subr.mxu0 0.0
    %707 = vmatpush1.msra.mxu0 0.0
    %708 = vmatprep.subr.mxu0 0.0
    %709 = vmatpush1.msra.mxu0 0.0
    %710 = vmatprep.subr.mxu0 0.0
    %711 = vmatpush1.msra.mxu0 0.0
    %712 = vmatprep.subr.mxu0 0.0
    %713 = vmatpush1.msra.mxu0 0.0
    %714 = vmatprep.subr.mxu0 0.0
    %715 = vmatpush1.msra.mxu0 0.0
    %716 = vmatprep.subr.mxu0 0.0
    %717 = vmatpush1.msra.mxu0 0.0
    %718 = vmatprep.subr.mxu0 0.0
    %719 = vmatpush1.msra.mxu0 0.0
    %720 = vmatprep.subr.mxu0 0.0
    %721 = vmatpush1.msra.mxu0 0.0
    %722 = vmatprep.subr.mxu0 0.0
    %723 = vmatpush1.msra.mxu0 0.0
    %724 = vmatprep.subr.mxu0 0.0
    %725 = vmatpush1.msra.mxu0 0.0
    %726 = vmatprep.subr.mxu0 0.0
    %727 = vmatpush1.msra.mxu0 0.0
    %728 = vmatprep.subr.mxu0 0.0
    %729 = vmatpush1.msra.mxu0 0.0
    %730 = vmatprep.subr.mxu0 0.0
    %731 = vmatpush1.msra.mxu0 0.0
    %732 = vmatprep.subr.mxu0 0.0
    %733 = vmatpush1.msra.mxu0 0.0
    %734 = vmatprep.subr.mxu0 0.0
    %735 = vmatpush1.msra.mxu0 0.0
    %736 = vmatprep.subr.mxu0 0.0
    %737 = vmatpush1.msra.mxu0 0.0
    %738 = vmatprep.subr.mxu0 0.0
    %739 = vmatpush1.msra.mxu0 0.0
    %740 = vmatprep.subr.mxu0 0.0
    %741 = vmatpush1.msra.mxu0 0.0
    %742 = vmatprep.subr.mxu0 0.0
    %743 = vmatpush1.msra.mxu0 0.0
    %744 = vmatprep.subr.mxu0 0.0
    %745 = vmatpush1.msra.mxu0 0.0
    %746 = vmatprep.subr.mxu0 0.0
    %747 = vmatpush1.msra.mxu0 0.0
    %748 = vmatprep.subr.mxu0 0.0
    %749 = vmatpush1.msra.mxu0 0.0
    %750 = vmatprep.subr.mxu0 0.0
    %751 = vmatpush1.msra.mxu0 0.0
    %752 = vmatprep.subr.mxu0 0.0
    %753 = vmatpush1.msra.mxu0 0.0
    %754 = vmatprep.subr.mxu0 0.0
    %755 = vmatpush1.msra.mxu0 0.0
    %756 = vmatprep.subr.mxu0 0.0
    %757 = vmatpush1.msra.mxu0 0.0
    %758 = vmatprep.subr.mxu0 0.0
    %759 = vmatpush1.msra.mxu0 0.0
    %760 = vmatprep.subr.mxu0 0.0
    %761 = vmatpush1.msra.mxu0 0.0
    %762 = vmatprep.subr.mxu0 0.0
    %763 = vmatpush1.msra.mxu0 0.0
    %764 = vmatprep.subr.mxu0 0.0
    %765 = vmatpush1.msra.mxu0 0.0
    %766 = vmatprep.mubr.f32.mxu0 0.0
    %767 = vmatmul.mubr.f32.gmra.mrb[0].mxu0 %v700
    %v768 = vpop.f32.mrb[0].mxu0
    %v769 = vadd.f32 0.0, %v768
    %v770 = vpop.f32.mrb[0].mxu0
    %771 = vdwg.mxu0
    %vm772 = vcmask 15360
    %v774 = vsel %vm772, %v689, 0
    %v777 = vsel %vm772, %v690, 0
    %v780 = vsel %vm772, %v691, 0
    %v783 = vsel %vm772, %v692, 0
    %v786 = vsel %vm772, %v693, 0
    %v789 = vsel %vm772, %v694, 0
    %v792 = vsel %vm772, %v695, 0
    %v795 = vsel %vm772, %v696, 0
    %vm797 = vcmask 1041408
    %v799 = vsel %vm797, %v769, 0
    %801 = vmatprep.subr.mxu0 0.0
    %802 = vmatpush1.msra.mxu0 %v799
    %803 = vmatprep.subr.mxu0 0.0
    %804 = vmatpush1.msra.mxu0 0.0
    %805 = vmatprep.subr.mxu0 0.0
    %806 = vmatpush1.msra.mxu0 0.0
    %807 = vmatprep.subr.mxu0 0.0
    %808 = vmatpush1.msra.mxu0 0.0
    %809 = vmatprep.subr.mxu0 0.0
    %810 = vmatpush1.msra.mxu0 0.0
    %811 = vmatprep.subr.mxu0 0.0
    %812 = vmatpush1.msra.mxu0 0.0
    %813 = vmatprep.subr.mxu0 0.0
    %814 = vmatpush1.msra.mxu0 0.0
    %815 = vmatprep.subr.mxu0 0.0
    %816 = vmatpush1.msra.mxu0 0.0
    %817 = vmatprep.subr.mxu0 0.0
    %818 = vmatpush1.msra.mxu0 0.0
    %819 = vmatprep.subr.mxu0 0.0
    %820 = vmatpush1.msra.mxu0 0.0
    %821 = vmatprep.subr.mxu0 0.0
    %822 = vmatpush1.msra.mxu0 0.0
    %823 = vmatprep.subr.mxu0 0.0
    %824 = vmatpush1.msra.mxu0 0.0
    %825 = vmatprep.subr.mxu0 0.0
    %826 = vmatpush1.msra.mxu0 0.0
    %827 = vmatprep.subr.mxu0 0.0
    %828 = vmatpush1.msra.mxu0 0.0
    %829 = vmatprep.subr.mxu0 0.0
    %830 = vmatpush1.msra.mxu0 0.0
    %831 = vmatprep.subr.mxu0 0.0
    %832 = vmatpush1.msra.mxu0 0.0
    %833 = vmatprep.subr.mxu0 0.0
    %834 = vmatpush1.msra.mxu0 0.0
    %835 = vmatprep.subr.mxu0 0.0
    %836 = vmatpush1.msra.mxu0 0.0
    %837 = vmatprep.subr.mxu0 0.0
    %838 = vmatpush1.msra.mxu0 0.0
    %839 = vmatprep.subr.mxu0 0.0
    %840 = vmatpush1.msra.mxu0 0.0
    %841 = vmatprep.subr.mxu0 0.0
    %842 = vmatpush1.msra.mxu0 0.0
    %843 = vmatprep.subr.mxu0 0.0
    %844 = vmatpush1.msra.mxu0 0.0
    %845 = vmatprep.subr.mxu0 0.0
    %846 = vmatpush1.msra.mxu0 0.0
    %847 = vmatprep.subr.mxu0 0.0
    %848 = vmatpush1.msra.mxu0 0.0
    %849 = vmatprep.subr.mxu0 0.0
    %850 = vmatpush1.msra.mxu0 0.0
    %851 = vmatprep.subr.mxu0 0.0
    %852 = vmatpush1.msra.mxu0 0.0
    %853 = vmatprep.subr.mxu0 0.0
    %854 = vmatpush1.msra.mxu0 0.0
    %855 = vmatprep.subr.mxu0 0.0
    %856 = vmatpush1.msra.mxu0 0.0
    %857 = vmatprep.subr.mxu0 0.0
    %858 = vmatpush1.msra.mxu0 0.0
    %859 = vmatprep.subr.mxu0 0.0
    %860 = vmatpush1.msra.mxu0 0.0
    %861 = vmatprep.subr.mxu0 0.0
    %862 = vmatpush1.msra.mxu0 0.0
    %863 = vmatprep.subr.mxu0 0.0
    %864 = vmatpush1.msra.mxu0 0.0
    %865 = vmatprep.mubr.f32.mxu0 0.0
    %866 = vmatmul.mubr.f32.gmra.mrb[0].mxu0 %v774
    %v867 = vpop.f32.mrb[0].mxu0
    %v868 = vadd.f32 0.0, %v867
    %v869 = vpop.f32.mrb[0].mxu0
    %870 = vmatprep.mubr.f32.mxu0 0.0
    %871 = vmatmul.mubr.f32.gmra.mrb[0].mxu0 %v777
    %v872 = vpop.f32.mrb[0].mxu0
    %v873 = vadd.f32 0.0, %v872
    %v874 = vpop.f32.mrb[0].mxu0
    %875 = vmatprep.mubr.f32.mxu0 0.0
    %876 = vmatmul.mubr.f32.gmra.mrb[0].mxu0 %v780
    %v877 = vpop.f32.mrb[0].mxu0
    %v878 = vadd.f32 0.0, %v877
    %v879 = vpop.f32.mrb[0].mxu0
    %880 = vmatprep.mubr.f32.mxu0 0.0
    %881 = vmatmul.mubr.f32.gmra.mrb[0].mxu0 %v783
    %v882 = vpop.f32.mrb[0].mxu0
    %v883 = vadd.f32 0.0, %v882
    %v884 = vpop.f32.mrb[0].mxu0
    %885 = vmatprep.mubr.f32.mxu0 0.0
    %886 = vmatmul.mubr.f32.gmra.mrb[0].mxu0 %v786
    %v887 = vpop.f32.mrb[0].mxu0
    %v888 = vadd.f32 0.0, %v887
    %v889 = vpop.f32.mrb[0].mxu0
    %890 = vmatprep.mubr.f32.mxu0 0.0
    %891 = vmatmul.mubr.f32.gmra.mrb[0].mxu0 %v789
    %v892 = vpop.f32.mrb[0].mxu0
    %v893 = vadd.f32 0.0, %v892
    %v894 = vpop.f32.mrb[0].mxu0
    %895 = vmatprep.mubr.f32.mxu0 0.0
    %896 = vmatmul.mubr.f32.gmra.mrb[0].mxu0 %v792
    %v897 = vpop.f32.mrb[0].mxu0
    %v898 = vadd.f32 0.0, %v897
    %v899 = vpop.f32.mrb[0].mxu0
    %900 = vmatprep.mubr.f32.mxu0 0.0
    %901 = vmatmul.mubr.f32.gmra.mrb[0].mxu0 %v795
    %v902 = vpop.f32.mrb[0].mxu0
    %v903 = vadd.f32 0.0, %v902
    %v904 = vpop.f32.mrb[0].mxu0
    %905 = vdwg.mxu0
    %v906 = vld [vmem:[#allocation2 + $0x208] sm:$0x3f]
    %v907 = vld [vmem:[#allocation2 + $0x218] sm:$0xff]
    %v908 = vld [vmem:[#allocation2 + $0x220] sm:$0xff]
    %v909 = vld [vmem:[#allocation2 + $0x228] sm:$0xff]
    %v910 = vld [vmem:[#allocation2 + $0x230] sm:$0xff]
    %v911 = vld [vmem:[#allocation2 + $0x238] sm:$0xff]
    %v912 = vld [vmem:[#allocation2 + $0x240] sm:$0xff]
    %v913 = vld [vmem:[#allocation2 + $0x248] sm:$0xff]
    %v914 = vld [vmem:[#allocation2 + $0x250] sm:$0xff]
    %v915 = vld [vmem:[%s1 + $0x5] sm:$0x1]
    %v916 = vld [vmem:[%s1 + $0x6] sm:$0x1]
    %v917 = vld [vmem:[%s1 + $0x7] sm:$0x1]
    %v918 = vld [vmem:[%s4] sm:$0xff]
    %v919 = vld [vmem:[%s4 + $0x8] sm:$0xff]
    %v920 = vld [vmem:[%s4 + $0x10] sm:$0xff]
    %v921 = vld [vmem:[%s4 + $0x18] sm:$0xff]
    %v922 = vld [vmem:[%s4 + $0x20] sm:$0xff]
    %v923 = vld [vmem:[%s4 + $0x28] sm:$0xff]
    %v924 = vld [vmem:[%s4 + $0x30] sm:$0xff]
    %v925 = vld [vmem:[%s4 + $0x38] sm:$0xff]
    %vm926 = vcmask 48128
    %v928 = vsel %vm926, %v918, 0
    %v931 = vsel %vm926, %v919, 0
    %v934 = vsel %vm926, %v920, 0
    %v937 = vsel %vm926, %v921, 0
    %v940 = vsel %vm926, %v922, 0
    %v943 = vsel %vm926, %v923, 0
    %v946 = vsel %vm926, %v924, 0
    %v949 = vsel %vm926, %v925, 0
    %vm951 = vcmask 1045504
    %v953 = vsel %vm951, %v906, 0
    %955 = vmatprep.subr.mxu0 0.0
    %956 = vmatpush1.msra.mxu0 %v953
    %957 = vmatprep.subr.mxu0 0.0
    %958 = vmatpush1.msra.mxu0 0.0
    %959 = vmatprep.subr.mxu0 0.0
    %960 = vmatpush1.msra.mxu0 0.0
    %961 = vmatprep.subr.mxu0 0.0
    %962 = vmatpush1.msra.mxu0 0.0
    %963 = vmatprep.subr.mxu0 0.0
    %964 = vmatpush1.msra.mxu0 0.0
    %965 = vmatprep.subr.mxu0 0.0
    %966 = vmatpush1.msra.mxu0 0.0
    %967 = vmatprep.subr.mxu0 0.0
    %968 = vmatpush1.msra.mxu0 0.0
    %969 = vmatprep.subr.mxu0 0.0
    %970 = vmatpush1.msra.mxu0 0.0
    %971 = vmatprep.subr.mxu0 0.0
    %972 = vmatpush1.msra.mxu0 0.0
    %973 = vmatprep.subr.mxu0 0.0
    %974 = vmatpush1.msra.mxu0 0.0
    %975 = vmatprep.subr.mxu0 0.0
    %976 = vmatpush1.msra.mxu0 0.0
    %977 = vmatprep.subr.mxu0 0.0
    %978 = vmatpush1.msra.mxu0 0.0
    %979 = vmatprep.subr.mxu0 0.0
    %980 = vmatpush1.msra.mxu0 0.0
    %981 = vmatprep.subr.mxu0 0.0
    %982 = vmatpush1.msra.mxu0 0.0
    %983 = vmatprep.subr.mxu0 0.0
    %984 = vmatpush1.msra.mxu0 0.0
    %985 = vmatprep.subr.mxu0 0.0
    %986 = vmatpush1.msra.mxu0 0.0
    %987 = vmatprep.subr.mxu0 0.0
    %988 = vmatpush1.msra.mxu0 0.0
    %989 = vmatprep.subr.mxu0 0.0
    %990 = vmatpush1.msra.mxu0 0.0
    %991 = vmatprep.subr.mxu0 0.0
    %992 = vmatpush1.msra.mxu0 0.0
    %993 = vmatprep.subr.mxu0 0.0
    %994 = vmatpush1.msra.mxu0 0.0
    %995 = vmatprep.subr.mxu0 0.0
    %996 = vmatpush1.msra.mxu0 0.0
    %997 = vmatprep.subr.mxu0 0.0
    %998 = vmatpush1.msra.mxu0 0.0
    %999 = vmatprep.subr.mxu0 0.0
    %1000 = vmatpush1.msra.mxu0 0.0
    %1001 = vmatprep.subr.mxu0 0.0
    %1002 = vmatpush1.msra.mxu0 0.0
    %1003 = vmatprep.subr.mxu0 0.0
    %1004 = vmatpush1.msra.mxu0 0.0
    %1005 = vmatprep.subr.mxu0 0.0
    %1006 = vmatpush1.msra.mxu0 0.0
    %1007 = vmatprep.subr.mxu0 0.0
    %1008 = vmatpush1.msra.mxu0 0.0
    %1009 = vmatprep.subr.mxu0 0.0
    %1010 = vmatpush1.msra.mxu0 0.0
    %1011 = vmatprep.subr.mxu0 0.0
    %1012 = vmatpush1.msra.mxu0 0.0
    %1013 = vmatprep.subr.mxu0 0.0
    %1014 = vmatpush1.msra.mxu0 0.0
    %1015 = vmatprep.subr.mxu0 0.0
    %1016 = vmatpush1.msra.mxu0 0.0
    %1017 = vmatprep.subr.mxu0 0.0
    %1018 = vmatpush1.msra.mxu0 0.0
    %1019 = vmatprep.mubr.f32.mxu0 0.0
    %1020 = vmatmul.mubr.f32.gmra.mrb[0].mxu0 %v928
    %v1021 = vpop.f32.mrb[0].mxu0
    %v1022 = vadd.f32 %v868, %v1021
    %v1023 = vpop.f32.mrb[0].mxu0
    %1024 = vmatprep.mubr.f32.mxu0 0.0
    %1025 = vmatmul.mubr.f32.gmra.mrb[0].mxu0 %v931
    %v1026 = vpop.f32.mrb[0].mxu0
    %v1027 = vadd.f32 %v873, %v1026
    %v1028 = vpop.f32.mrb[0].mxu0
    %1029 = vmatprep.mubr.f32.mxu0 0.0
    %1030 = vmatmul.mubr.f32.gmra.mrb[0].mxu0 %v934
    %v1031 = vpop.f32.mrb[0].mxu0
    %v1032 = vadd.f32 %v878, %v1031
    %v1033 = vpop.f32.mrb[0].mxu0
    %1034 = vmatprep.mubr.f32.mxu0 0.0
    %1035 = vmatmul.mubr.f32.gmra.mrb[0].mxu0 %v937
    %v1036 = vpop.f32.mrb[0].mxu0
    %v1037 = vadd.f32 %v883, %v1036
    %v1038 = vpop.f32.mrb[0].mxu0
    %1039 = vmatprep.mubr.f32.mxu0 0.0
    %1040 = vmatmul.mubr.f32.gmra.mrb[0].mxu0 %v940
    %v1041 = vpop.f32.mrb[0].mxu0
    %v1042 = vadd.f32 %v888, %v1041
    %v1043 = vpop.f32.mrb[0].mxu0
    %1044 = vmatprep.mubr.f32.mxu0 0.0
    %1045 = vmatmul.mubr.f32.gmra.mrb[0].mxu0 %v943
    %v1046 = vpop.f32.mrb[0].mxu0
    %v1047 = vadd.f32 %v893, %v1046
    %v1048 = vpop.f32.mrb[0].mxu0
    %1049 = vmatprep.mubr.f32.mxu0 0.0
    %1050 = vmatmul.mubr.f32.gmra.mrb[0].mxu0 %v946
    %v1051 = vpop.f32.mrb[0].mxu0
    %v1052 = vadd.f32 %v898, %v1051
    %v1053 = vpop.f32.mrb[0].mxu0
    %1054 = vmatprep.mubr.f32.mxu0 0.0
    %1055 = vmatmul.mubr.f32.gmra.mrb[0].mxu0 %v949
    %v1056 = vpop.f32.mrb[0].mxu0
    %v1057 = vadd.f32 %v903, %v1056
    %v1058 = vpop.f32.mrb[0].mxu0
    %1059 = vdwg.mxu0
    %v1060 = vlaneseq
    %v1061 = vshrl.u32 %v1060, 7
    %v1062 = vsub.s32 0, %v1061
    %v1063 = vrot.slane %v915, %v1062
    %v1064 = vadd.f32 %v1022, %v1063
    %v1065 = vadd.f32 %v1027, %v1063
    %v1066 = vadd.f32 %v1032, %v1063
    %v1067 = vadd.f32 %v1037, %v1063
    %v1068 = vadd.f32 %v1042, %v1063
    %v1069 = vadd.f32 %v1047, %v1063
    %v1070 = vadd.f32 %v1052, %v1063
    %v1071 = vadd.f32 %v1057, %v1063
    %vm1072 = vcmp.gt.f32.partialorder %v1064, 0.0
    %vm1073 = vcmp.gt.f32.partialorder %v1065, 0.0
    %vm1074 = vcmp.gt.f32.partialorder %v1066, 0.0
    %vm1075 = vcmp.gt.f32.partialorder %v1067, 0.0
    %vm1076 = vcmp.gt.f32.partialorder %v1068, 0.0
    %vm1077 = vcmp.gt.f32.partialorder %v1069, 0.0
    %vm1078 = vcmp.gt.f32.partialorder %v1070, 0.0
    %vm1079 = vcmp.gt.f32.partialorder %v1071, 0.0
    %v1080 = vmul.f32 %v1064, 0.2
    %v1081 = vmul.f32 %v1065, 0.2
    %v1082 = vmul.f32 %v1066, 0.2
    %v1083 = vmul.f32 %v1067, 0.2
    %v1084 = vmul.f32 %v1068, 0.2
    %v1085 = vmul.f32 %v1069, 0.2
    %v1086 = vmul.f32 %v1070, 0.2
    %v1087 = vmul.f32 %v1071, 0.2
    %v1088 = vsel %vm1072, %v1064, %v1080
    %v1089 = vsel %vm1073, %v1065, %v1081
    %v1090 = vsel %vm1074, %v1066, %v1082
    %v1091 = vsel %vm1075, %v1067, %v1083
    %v1092 = vsel %vm1076, %v1068, %v1084
    %v1093 = vsel %vm1077, %v1069, %v1085
    %v1094 = vsel %vm1078, %v1070, %v1086
    %v1095 = vsel %vm1079, %v1071, %v1087
    %v1096 = vlaneseq
    %v1097 = vshrl.u32 %v1096, 7
    %v1098 = vsub.s32 0, %v1097
    %v1099 = vrot.slane %v916, %v1098
    %v1101 = vsel %vm360, %v1088, 0
    %v1104 = vsel %vm360, %v1089, 0
    %v1107 = vsel %vm360, %v1090, 0
    %v1110 = vsel %vm360, %v1091, 0
    %v1113 = vsel %vm360, %v1092, 0
    %v1116 = vsel %vm360, %v1093, 0
    %v1119 = vsel %vm360, %v1094, 0
    %v1122 = vsel %vm360, %v1095, 0
    %1124 = vmatprep.subr.mxu0 0.0
    %1125 = vmatpush1.msra.mxu0 %v907
    %1126 = vmatprep.subr.mxu0 0.0
    %1127 = vmatpush1.msra.mxu0 %v908
    %1128 = vmatprep.subr.mxu0 0.0
    %1129 = vmatpush1.msra.mxu0 %v909
    %1130 = vmatprep.subr.mxu0 0.0
    %1131 = vmatpush1.msra.mxu0 %v910
    %1132 = vmatprep.subr.mxu0 0.0
    %1133 = vmatpush1.msra.mxu0 0.0
    %1134 = vmatprep.subr.mxu0 0.0
    %1135 = vmatpush1.msra.mxu0 0.0
    %1136 = vmatprep.subr.mxu0 0.0
    %1137 = vmatpush1.msra.mxu0 0.0
    %1138 = vmatprep.subr.mxu0 0.0
    %1139 = vmatpush1.msra.mxu0 0.0
    %1140 = vmatprep.subr.mxu0 0.0
    %1141 = vmatpush1.msra.mxu0 0.0
    %1142 = vmatprep.subr.mxu0 0.0
    %1143 = vmatpush1.msra.mxu0 0.0
    %1144 = vmatprep.subr.mxu0 0.0
    %1145 = vmatpush1.msra.mxu0 0.0
    %1146 = vmatprep.subr.mxu0 0.0
    %1147 = vmatpush1.msra.mxu0 0.0
    %1148 = vmatprep.subr.mxu0 0.0
    %1149 = vmatpush1.msra.mxu0 0.0
    %1150 = vmatprep.subr.mxu0 0.0
    %1151 = vmatpush1.msra.mxu0 0.0
    %1152 = vmatprep.subr.mxu0 0.0
    %1153 = vmatpush1.msra.mxu0 0.0
    %1154 = vmatprep.subr.mxu0 0.0
    %1155 = vmatpush1.msra.mxu0 0.0
    %1156 = vmatprep.subr.mxu0 0.0
    %1157 = vmatpush1.msra.mxu0 0.0
    %1158 = vmatprep.subr.mxu0 0.0
    %1159 = vmatpush1.msra.mxu0 0.0
    %1160 = vmatprep.subr.mxu0 0.0
    %1161 = vmatpush1.msra.mxu0 0.0
    %1162 = vmatprep.subr.mxu0 0.0
    %1163 = vmatpush1.msra.mxu0 0.0
    %1164 = vmatprep.subr.mxu0 0.0
    %1165 = vmatpush1.msra.mxu0 0.0
    %1166 = vmatprep.subr.mxu0 0.0
    %1167 = vmatpush1.msra.mxu0 0.0
    %1168 = vmatprep.subr.mxu0 0.0
    %1169 = vmatpush1.msra.mxu0 0.0
    %1170 = vmatprep.subr.mxu0 0.0
    %1171 = vmatpush1.msra.mxu0 0.0
    %1172 = vmatprep.subr.mxu0 0.0
    %1173 = vmatpush1.msra.mxu0 0.0
    %1174 = vmatprep.subr.mxu0 0.0
    %1175 = vmatpush1.msra.mxu0 0.0
    %1176 = vmatprep.subr.mxu0 0.0
    %1177 = vmatpush1.msra.mxu0 0.0
    %1178 = vmatprep.subr.mxu0 0.0
    %1179 = vmatpush1.msra.mxu0 0.0
    %1180 = vmatprep.subr.mxu0 0.0
    %1181 = vmatpush1.msra.mxu0 0.0
    %1182 = vmatprep.subr.mxu0 0.0
    %1183 = vmatpush1.msra.mxu0 0.0
    %1184 = vmatprep.subr.mxu0 0.0
    %1185 = vmatpush1.msra.mxu0 0.0
    %1186 = vmatprep.subr.mxu0 0.0
    %1187 = vmatpush1.msra.mxu0 0.0
    %1188 = vmatprep.mubr.f32.mxu0 0.0
    %1189 = vmatmul.mubr.f32.gmra.mrb[0].mxu0 %v1101
    %v1190 = vpop.f32.mrb[0].mxu0
    %v1191 = vadd.f32 %v1099, %v1190
    %v1192 = vpop.f32.mrb[0].mxu0
    %1193 = vmatprep.mubr.f32.mxu0 0.0
    %1194 = vmatmul.mubr.f32.gmra.mrb[0].mxu0 %v1104
    %v1195 = vpop.f32.mrb[0].mxu0
    %v1196 = vadd.f32 %v1099, %v1195
    %v1197 = vpop.f32.mrb[0].mxu0
    %1198 = vmatprep.mubr.f32.mxu0 0.0
    %1199 = vmatmul.mubr.f32.gmra.mrb[0].mxu0 %v1107
    %v1200 = vpop.f32.mrb[0].mxu0
    %v1201 = vadd.f32 %v1099, %v1200
    %v1202 = vpop.f32.mrb[0].mxu0
    %1203 = vmatprep.mubr.f32.mxu0 0.0
    %1204 = vmatmul.mubr.f32.gmra.mrb[0].mxu0 %v1110
    %v1205 = vpop.f32.mrb[0].mxu0
    %v1206 = vadd.f32 %v1099, %v1205
    %v1207 = vpop.f32.mrb[0].mxu0
    %1208 = vmatprep.mubr.f32.mxu0 0.0
    %1209 = vmatmul.mubr.f32.gmra.mrb[0].mxu0 %v1113
    %v1210 = vpop.f32.mrb[0].mxu0
    %v1211 = vadd.f32 %v1099, %v1210
    %v1212 = vpop.f32.mrb[0].mxu0
    %1213 = vmatprep.mubr.f32.mxu0 0.0
    %1214 = vmatmul.mubr.f32.gmra.mrb[0].mxu0 %v1116
    %v1215 = vpop.f32.mrb[0].mxu0
    %v1216 = vadd.f32 %v1099, %v1215
    %v1217 = vpop.f32.mrb[0].mxu0
    %1218 = vmatprep.mubr.f32.mxu0 0.0
    %1219 = vmatmul.mubr.f32.gmra.mrb[0].mxu0 %v1119
    %v1220 = vpop.f32.mrb[0].mxu0
    %v1221 = vadd.f32 %v1099, %v1220
    %v1222 = vpop.f32.mrb[0].mxu0
    %1223 = vmatprep.mubr.f32.mxu0 0.0
    %1224 = vmatmul.mubr.f32.gmra.mrb[0].mxu0 %v1122
    %v1225 = vpop.f32.mrb[0].mxu0
    %v1226 = vadd.f32 %v1099, %v1225
    %v1227 = vpop.f32.mrb[0].mxu0
    %1228 = vdwg.mxu0
    %vm1229 = vcmp.gt.f32.partialorder %v1191, 0.0
    %vm1230 = vcmp.gt.f32.partialorder %v1196, 0.0
    %vm1231 = vcmp.gt.f32.partialorder %v1201, 0.0
    %vm1232 = vcmp.gt.f32.partialorder %v1206, 0.0
    %vm1233 = vcmp.gt.f32.partialorder %v1211, 0.0
    %vm1234 = vcmp.gt.f32.partialorder %v1216, 0.0
    %vm1235 = vcmp.gt.f32.partialorder %v1221, 0.0
    %vm1236 = vcmp.gt.f32.partialorder %v1226, 0.0
    %v1237 = vmul.f32 %v1191, 0.2
    %v1238 = vmul.f32 %v1196, 0.2
    %v1239 = vmul.f32 %v1201, 0.2
    %v1240 = vmul.f32 %v1206, 0.2
    %v1241 = vmul.f32 %v1211, 0.2
    %v1242 = vmul.f32 %v1216, 0.2
    %v1243 = vmul.f32 %v1221, 0.2
    %v1244 = vmul.f32 %v1226, 0.2
    %v1245 = vsel %vm1229, %v1191, %v1237
    %v1246 = vsel %vm1230, %v1196, %v1238
    %v1247 = vsel %vm1231, %v1201, %v1239
    %v1248 = vsel %vm1232, %v1206, %v1240
    %v1249 = vsel %vm1233, %v1211, %v1241
    %v1250 = vsel %vm1234, %v1216, %v1242
    %v1251 = vsel %vm1235, %v1221, %v1243
    %v1252 = vsel %vm1236, %v1226, %v1244
    %v1253 = vlaneseq
    %v1254 = vshrl.u32 %v1253, 7
    %v1255 = vsub.s32 0, %v1254
    %v1256 = vrot.slane %v917, %v1255
    %v1258 = vsel %vm360, %v1245, 0
    %v1261 = vsel %vm360, %v1246, 0
    %v1264 = vsel %vm360, %v1247, 0
    %v1267 = vsel %vm360, %v1248, 0
    %v1270 = vsel %vm360, %v1249, 0
    %v1273 = vsel %vm360, %v1250, 0
    %v1276 = vsel %vm360, %v1251, 0
    %v1279 = vsel %vm360, %v1252, 0
    %1281 = vmatprep.subr.mxu0 0.0
    %1282 = vmatpush1.msra.mxu0 %v911
    %1283 = vmatprep.subr.mxu0 0.0
    %1284 = vmatpush1.msra.mxu0 %v912
    %1285 = vmatprep.subr.mxu0 0.0
    %1286 = vmatpush1.msra.mxu0 %v913
    %1287 = vmatprep.subr.mxu0 0.0
    %1288 = vmatpush1.msra.mxu0 %v914
    %1289 = vmatprep.subr.mxu0 0.0
    %1290 = vmatpush1.msra.mxu0 0.0
    %1291 = vmatprep.subr.mxu0 0.0
    %1292 = vmatpush1.msra.mxu0 0.0
    %1293 = vmatprep.subr.mxu0 0.0
    %1294 = vmatpush1.msra.mxu0 0.0
    %1295 = vmatprep.subr.mxu0 0.0
    %1296 = vmatpush1.msra.mxu0 0.0
    %1297 = vmatprep.subr.mxu0 0.0
    %1298 = vmatpush1.msra.mxu0 0.0
    %1299 = vmatprep.subr.mxu0 0.0
    %1300 = vmatpush1.msra.mxu0 0.0
    %1301 = vmatprep.subr.mxu0 0.0
    %1302 = vmatpush1.msra.mxu0 0.0
    %1303 = vmatprep.subr.mxu0 0.0
    %1304 = vmatpush1.msra.mxu0 0.0
    %1305 = vmatprep.subr.mxu0 0.0
    %1306 = vmatpush1.msra.mxu0 0.0
    %1307 = vmatprep.subr.mxu0 0.0
    %1308 = vmatpush1.msra.mxu0 0.0
    %1309 = vmatprep.subr.mxu0 0.0
    %1310 = vmatpush1.msra.mxu0 0.0
    %1311 = vmatprep.subr.mxu0 0.0
    %1312 = vmatpush1.msra.mxu0 0.0
    %1313 = vmatprep.subr.mxu0 0.0
    %1314 = vmatpush1.msra.mxu0 0.0
    %1315 = vmatprep.subr.mxu0 0.0
    %1316 = vmatpush1.msra.mxu0 0.0
    %1317 = vmatprep.subr.mxu0 0.0
    %1318 = vmatpush1.msra.mxu0 0.0
    %1319 = vmatprep.subr.mxu0 0.0
    %1320 = vmatpush1.msra.mxu0 0.0
    %1321 = vmatprep.subr.mxu0 0.0
    %1322 = vmatpush1.msra.mxu0 0.0
    %1323 = vmatprep.subr.mxu0 0.0
    %1324 = vmatpush1.msra.mxu0 0.0
    %1325 = vmatprep.subr.mxu0 0.0
    %1326 = vmatpush1.msra.mxu0 0.0
    %1327 = vmatprep.subr.mxu0 0.0
    %1328 = vmatpush1.msra.mxu0 0.0
    %1329 = vmatprep.subr.mxu0 0.0
    %1330 = vmatpush1.msra.mxu0 0.0
    %1331 = vmatprep.subr.mxu0 0.0
    %1332 = vmatpush1.msra.mxu0 0.0
    %1333 = vmatprep.subr.mxu0 0.0
    %1334 = vmatpush1.msra.mxu0 0.0
    %1335 = vmatprep.subr.mxu0 0.0
    %1336 = vmatpush1.msra.mxu0 0.0
    %1337 = vmatprep.subr.mxu0 0.0
    %1338 = vmatpush1.msra.mxu0 0.0
    %1339 = vmatprep.subr.mxu0 0.0
    %1340 = vmatpush1.msra.mxu0 0.0
    %1341 = vmatprep.subr.mxu0 0.0
    %1342 = vmatpush1.msra.mxu0 0.0
    %1343 = vmatprep.subr.mxu0 0.0
    %1344 = vmatpush1.msra.mxu0 0.0
    %1345 = vmatprep.mubr.f32.mxu0 0.0
    %1346 = vmatmul.mubr.f32.gmra.mrb[0].mxu0 %v1258
    %v1347 = vpop.f32.mrb[0].mxu0
    %v1348 = vadd.f32 %v1256, %v1347
    %v1349 = vpop.f32.mrb[0].mxu0
    %1350 = vmatprep.mubr.f32.mxu0 0.0
    %1351 = vmatmul.mubr.f32.gmra.mrb[0].mxu0 %v1261
    %v1352 = vpop.f32.mrb[0].mxu0
    %v1353 = vadd.f32 %v1256, %v1352
    %v1354 = vpop.f32.mrb[0].mxu0
    %1355 = vmatprep.mubr.f32.mxu0 0.0
    %1356 = vmatmul.mubr.f32.gmra.mrb[0].mxu0 %v1264
    %v1357 = vpop.f32.mrb[0].mxu0
    %v1358 = vadd.f32 %v1256, %v1357
    %v1359 = vpop.f32.mrb[0].mxu0
    %1360 = vmatprep.mubr.f32.mxu0 0.0
    %1361 = vmatmul.mubr.f32.gmra.mrb[0].mxu0 %v1267
    %v1362 = vpop.f32.mrb[0].mxu0
    %v1363 = vadd.f32 %v1256, %v1362
    %v1364 = vpop.f32.mrb[0].mxu0
    %1365 = vmatprep.mubr.f32.mxu0 0.0
    %1366 = vmatmul.mubr.f32.gmra.mrb[0].mxu0 %v1270
    %v1367 = vpop.f32.mrb[0].mxu0
    %v1368 = vadd.f32 %v1256, %v1367
    %v1369 = vpop.f32.mrb[0].mxu0
    %1370 = vmatprep.mubr.f32.mxu0 0.0
    %1371 = vmatmul.mubr.f32.gmra.mrb[0].mxu0 %v1273
    %v1372 = vpop.f32.mrb[0].mxu0
    %v1373 = vadd.f32 %v1256, %v1372
    %v1374 = vpop.f32.mrb[0].mxu0
    %1375 = vmatprep.mubr.f32.mxu0 0.0
    %1376 = vmatmul.mubr.f32.gmra.mrb[0].mxu0 %v1276
    %v1377 = vpop.f32.mrb[0].mxu0
    %v1378 = vadd.f32 %v1256, %v1377
    %v1379 = vpop.f32.mrb[0].mxu0
    %1380 = vmatprep.mubr.f32.mxu0 0.0
    %1381 = vmatmul.mubr.f32.gmra.mrb[0].mxu0 %v1279
    %v1382 = vpop.f32.mrb[0].mxu0
    %v1383 = vadd.f32 %v1256, %v1382
    %v1384 = vpop.f32.mrb[0].mxu0
    %1385 = vdwg.mxu0
    %vm1386 = vcmp.gt.f32.partialorder %v1348, 0.0
    %vm1387 = vcmp.gt.f32.partialorder %v1353, 0.0
    %vm1388 = vcmp.gt.f32.partialorder %v1358, 0.0
    %vm1389 = vcmp.gt.f32.partialorder %v1363, 0.0
    %vm1390 = vcmp.gt.f32.partialorder %v1368, 0.0
    %vm1391 = vcmp.gt.f32.partialorder %v1373, 0.0
    %vm1392 = vcmp.gt.f32.partialorder %v1378, 0.0
    %vm1393 = vcmp.gt.f32.partialorder %v1383, 0.0
    %v1394 = vmul.f32 %v1348, 0.2
    %v1395 = vmul.f32 %v1353, 0.2
    %v1396 = vmul.f32 %v1358, 0.2
    %v1397 = vmul.f32 %v1363, 0.2
    %v1398 = vmul.f32 %v1368, 0.2
    %v1399 = vmul.f32 %v1373, 0.2
    %v1400 = vmul.f32 %v1378, 0.2
    %v1401 = vmul.f32 %v1383, 0.2
    %v1402 = vsel %vm1386, %v1348, %v1394
    %v1403 = vsel %vm1387, %v1353, %v1395
    %v1404 = vsel %vm1388, %v1358, %v1396
    %v1405 = vsel %vm1389, %v1363, %v1397
    %v1406 = vsel %vm1390, %v1368, %v1398
    %v1407 = vsel %vm1391, %v1373, %v1399
    %v1408 = vsel %vm1392, %v1378, %v1400
    %v1409 = vsel %vm1393, %v1383, %v1401
    %v1410 = vld [vmem:[%s5] sm:$0xff]
    %v1411 = vld [vmem:[%s5 + $0x8] sm:$0xff]
    %v1412 = vld [vmem:[%s5 + $0x10] sm:$0xff]
    %v1413 = vld [vmem:[%s5 + $0x18] sm:$0xff]
    %v1414 = vld [vmem:[%s5 + $0x20] sm:$0xff]
    %v1415 = vld [vmem:[%s5 + $0x28] sm:$0xff]
    %v1416 = vld [vmem:[%s5 + $0x30] sm:$0xff]
    %v1417 = vld [vmem:[%s5 + $0x38] sm:$0xff]
    %v1419 = vsel %vm926, %v1410, 0
    %v1422 = vsel %vm926, %v1411, 0
    %v1425 = vsel %vm926, %v1412, 0
    %v1428 = vsel %vm926, %v1413, 0
    %v1431 = vsel %vm926, %v1414, 0
    %v1434 = vsel %vm926, %v1415, 0
    %v1437 = vsel %vm926, %v1416, 0
    %v1440 = vsel %vm926, %v1417, 0
    %1442 = vmatprep.subr.mxu0 0.0
    %1443 = vmatpush1.msra.mxu0 %v953
    %1444 = vmatprep.subr.mxu0 0.0
    %1445 = vmatpush1.msra.mxu0 0.0
    %1446 = vmatprep.subr.mxu0 0.0
    %1447 = vmatpush1.msra.mxu0 0.0
    %1448 = vmatprep.subr.mxu0 0.0
    %1449 = vmatpush1.msra.mxu0 0.0
    %1450 = vmatprep.subr.mxu0 0.0
    %1451 = vmatpush1.msra.mxu0 0.0
    %1452 = vmatprep.subr.mxu0 0.0
    %1453 = vmatpush1.msra.mxu0 0.0
    %1454 = vmatprep.subr.mxu0 0.0
    %1455 = vmatpush1.msra.mxu0 0.0
    %1456 = vmatprep.subr.mxu0 0.0
    %1457 = vmatpush1.msra.mxu0 0.0
    %1458 = vmatprep.subr.mxu0 0.0
    %1459 = vmatpush1.msra.mxu0 0.0
    %1460 = vmatprep.subr.mxu0 0.0
    %1461 = vmatpush1.msra.mxu0 0.0
    %1462 = vmatprep.subr.mxu0 0.0
    %1463 = vmatpush1.msra.mxu0 0.0
    %1464 = vmatprep.subr.mxu0 0.0
    %1465 = vmatpush1.msra.mxu0 0.0
    %1466 = vmatprep.subr.mxu0 0.0
    %1467 = vmatpush1.msra.mxu0 0.0
    %1468 = vmatprep.subr.mxu0 0.0
    %1469 = vmatpush1.msra.mxu0 0.0
    %1470 = vmatprep.subr.mxu0 0.0
    %1471 = vmatpush1.msra.mxu0 0.0
    %1472 = vmatprep.subr.mxu0 0.0
    %1473 = vmatpush1.msra.mxu0 0.0
    %1474 = vmatprep.subr.mxu0 0.0
    %1475 = vmatpush1.msra.mxu0 0.0
    %1476 = vmatprep.subr.mxu0 0.0
    %1477 = vmatpush1.msra.mxu0 0.0
    %1478 = vmatprep.subr.mxu0 0.0
    %1479 = vmatpush1.msra.mxu0 0.0
    %1480 = vmatprep.subr.mxu0 0.0
    %1481 = vmatpush1.msra.mxu0 0.0
    %1482 = vmatprep.subr.mxu0 0.0
    %1483 = vmatpush1.msra.mxu0 0.0
    %1484 = vmatprep.subr.mxu0 0.0
    %1485 = vmatpush1.msra.mxu0 0.0
    %1486 = vmatprep.subr.mxu0 0.0
    %1487 = vmatpush1.msra.mxu0 0.0
    %1488 = vmatprep.subr.mxu0 0.0
    %1489 = vmatpush1.msra.mxu0 0.0
    %1490 = vmatprep.subr.mxu0 0.0
    %1491 = vmatpush1.msra.mxu0 0.0
    %1492 = vmatprep.subr.mxu0 0.0
    %1493 = vmatpush1.msra.mxu0 0.0
    %1494 = vmatprep.subr.mxu0 0.0
    %1495 = vmatpush1.msra.mxu0 0.0
    %1496 = vmatprep.subr.mxu0 0.0
    %1497 = vmatpush1.msra.mxu0 0.0
    %1498 = vmatprep.subr.mxu0 0.0
    %1499 = vmatpush1.msra.mxu0 0.0
    %1500 = vmatprep.subr.mxu0 0.0
    %1501 = vmatpush1.msra.mxu0 0.0
    %1502 = vmatprep.subr.mxu0 0.0
    %1503 = vmatpush1.msra.mxu0 0.0
    %1504 = vmatprep.subr.mxu0 0.0
    %1505 = vmatpush1.msra.mxu0 0.0
    %1506 = vmatprep.mubr.f32.mxu0 0.0
    %1507 = vmatmul.mubr.f32.gmra.mrb[0].mxu0 %v1419
    %v1508 = vpop.f32.mrb[0].mxu0
    %v1509 = vadd.f32 %v868, %v1508
    %v1510 = vpop.f32.mrb[0].mxu0
    %1511 = vmatprep.mubr.f32.mxu0 0.0
    %1512 = vmatmul.mubr.f32.gmra.mrb[0].mxu0 %v1422
    %v1513 = vpop.f32.mrb[0].mxu0
    %v1514 = vadd.f32 %v873, %v1513
    %v1515 = vpop.f32.mrb[0].mxu0
    %1516 = vmatprep.mubr.f32.mxu0 0.0
    %1517 = vmatmul.mubr.f32.gmra.mrb[0].mxu0 %v1425
    %v1518 = vpop.f32.mrb[0].mxu0
    %v1519 = vadd.f32 %v878, %v1518
    %v1520 = vpop.f32.mrb[0].mxu0
    %1521 = vmatprep.mubr.f32.mxu0 0.0
    %1522 = vmatmul.mubr.f32.gmra.mrb[0].mxu0 %v1428
    %v1523 = vpop.f32.mrb[0].mxu0
    %v1524 = vadd.f32 %v883, %v1523
    %v1525 = vpop.f32.mrb[0].mxu0
    %1526 = vmatprep.mubr.f32.mxu0 0.0
    %1527 = vmatmul.mubr.f32.gmra.mrb[0].mxu0 %v1431
    %v1528 = vpop.f32.mrb[0].mxu0
    %v1529 = vadd.f32 %v888, %v1528
    %v1530 = vpop.f32.mrb[0].mxu0
    %1531 = vmatprep.mubr.f32.mxu0 0.0
    %1532 = vmatmul.mubr.f32.gmra.mrb[0].mxu0 %v1434
    %v1533 = vpop.f32.mrb[0].mxu0
    %v1534 = vadd.f32 %v893, %v1533
    %v1535 = vpop.f32.mrb[0].mxu0
    %1536 = vmatprep.mubr.f32.mxu0 0.0
    %1537 = vmatmul.mubr.f32.gmra.mrb[0].mxu0 %v1437
    %v1538 = vpop.f32.mrb[0].mxu0
    %v1539 = vadd.f32 %v898, %v1538
    %v1540 = vpop.f32.mrb[0].mxu0
    %1541 = vmatprep.mubr.f32.mxu0 0.0
    %1542 = vmatmul.mubr.f32.gmra.mrb[0].mxu0 %v1440
    %v1543 = vpop.f32.mrb[0].mxu0
    %v1544 = vadd.f32 %v903, %v1543
    %v1545 = vpop.f32.mrb[0].mxu0
    %1546 = vdwg.mxu0
    %v1547 = vadd.f32 %v1509, %v1063
    %v1548 = vadd.f32 %v1514, %v1063
    %v1549 = vadd.f32 %v1519, %v1063
    %v1550 = vadd.f32 %v1524, %v1063
    %v1551 = vadd.f32 %v1529, %v1063
    %v1552 = vadd.f32 %v1534, %v1063
    %v1553 = vadd.f32 %v1539, %v1063
    %v1554 = vadd.f32 %v1544, %v1063
    %vm1555 = vcmp.gt.f32.partialorder %v1547, 0.0
    %vm1556 = vcmp.gt.f32.partialorder %v1548, 0.0
    %vm1557 = vcmp.gt.f32.partialorder %v1549, 0.0
    %vm1558 = vcmp.gt.f32.partialorder %v1550, 0.0
    %vm1559 = vcmp.gt.f32.partialorder %v1551, 0.0
    %vm1560 = vcmp.gt.f32.partialorder %v1552, 0.0
    %vm1561 = vcmp.gt.f32.partialorder %v1553, 0.0
    %vm1562 = vcmp.gt.f32.partialorder %v1554, 0.0
    %v1563 = vmul.f32 %v1547, 0.2
    %v1564 = vmul.f32 %v1548, 0.2
    %v1565 = vmul.f32 %v1549, 0.2
    %v1566 = vmul.f32 %v1550, 0.2
    %v1567 = vmul.f32 %v1551, 0.2
    %v1568 = vmul.f32 %v1552, 0.2
    %v1569 = vmul.f32 %v1553, 0.2
    %v1570 = vmul.f32 %v1554, 0.2
    %v1571 = vsel %vm1555, %v1547, %v1563
    %v1572 = vsel %vm1556, %v1548, %v1564
    %v1573 = vsel %vm1557, %v1549, %v1565
    %v1574 = vsel %vm1558, %v1550, %v1566
    %v1575 = vsel %vm1559, %v1551, %v1567
    %v1576 = vsel %vm1560, %v1552, %v1568
    %v1577 = vsel %vm1561, %v1553, %v1569
    %v1578 = vsel %vm1562, %v1554, %v1570
    %v1580 = vsel %vm360, %v1571, 0
    %v1583 = vsel %vm360, %v1572, 0
    %v1586 = vsel %vm360, %v1573, 0
    %v1589 = vsel %vm360, %v1574, 0
    %v1592 = vsel %vm360, %v1575, 0
    %v1595 = vsel %vm360, %v1576, 0
    %v1598 = vsel %vm360, %v1577, 0
    %v1601 = vsel %vm360, %v1578, 0
    %1603 = vmatprep.subr.mxu0 0.0
    %1604 = vmatpush1.msra.mxu0 %v907
    %1605 = vmatprep.subr.mxu0 0.0
    %1606 = vmatpush1.msra.mxu0 %v908
    %1607 = vmatprep.subr.mxu0 0.0
    %1608 = vmatpush1.msra.mxu0 %v909
    %1609 = vmatprep.subr.mxu0 0.0
    %1610 = vmatpush1.msra.mxu0 %v910
    %1611 = vmatprep.subr.mxu0 0.0
    %1612 = vmatpush1.msra.mxu0 0.0
    %1613 = vmatprep.subr.mxu0 0.0
    %1614 = vmatpush1.msra.mxu0 0.0
    %1615 = vmatprep.subr.mxu0 0.0
    %1616 = vmatpush1.msra.mxu0 0.0
    %1617 = vmatprep.subr.mxu0 0.0
    %1618 = vmatpush1.msra.mxu0 0.0
    %1619 = vmatprep.subr.mxu0 0.0
    %1620 = vmatpush1.msra.mxu0 0.0
    %1621 = vmatprep.subr.mxu0 0.0
    %1622 = vmatpush1.msra.mxu0 0.0
    %1623 = vmatprep.subr.mxu0 0.0
    %1624 = vmatpush1.msra.mxu0 0.0
    %1625 = vmatprep.subr.mxu0 0.0
    %1626 = vmatpush1.msra.mxu0 0.0
    %1627 = vmatprep.subr.mxu0 0.0
    %1628 = vmatpush1.msra.mxu0 0.0
    %1629 = vmatprep.subr.mxu0 0.0
    %1630 = vmatpush1.msra.mxu0 0.0
    %1631 = vmatprep.subr.mxu0 0.0
    %1632 = vmatpush1.msra.mxu0 0.0
    %1633 = vmatprep.subr.mxu0 0.0
    %1634 = vmatpush1.msra.mxu0 0.0
    %1635 = vmatprep.subr.mxu0 0.0
    %1636 = vmatpush1.msra.mxu0 0.0
    %1637 = vmatprep.subr.mxu0 0.0
    %1638 = vmatpush1.msra.mxu0 0.0
    %1639 = vmatprep.subr.mxu0 0.0
    %1640 = vmatpush1.msra.mxu0 0.0
    %1641 = vmatprep.subr.mxu0 0.0
    %1642 = vmatpush1.msra.mxu0 0.0
    %1643 = vmatprep.subr.mxu0 0.0
    %1644 = vmatpush1.msra.mxu0 0.0
    %1645 = vmatprep.subr.mxu0 0.0
    %1646 = vmatpush1.msra.mxu0 0.0
    %1647 = vmatprep.subr.mxu0 0.0
    %1648 = vmatpush1.msra.mxu0 0.0
    %1649 = vmatprep.subr.mxu0 0.0
    %1650 = vmatpush1.msra.mxu0 0.0
    %1651 = vmatprep.subr.mxu0 0.0
    %1652 = vmatpush1.msra.mxu0 0.0
    %1653 = vmatprep.subr.mxu0 0.0
    %1654 = vmatpush1.msra.mxu0 0.0
    %1655 = vmatprep.subr.mxu0 0.0
    %1656 = vmatpush1.msra.mxu0 0.0
    %1657 = vmatprep.subr.mxu0 0.0
    %1658 = vmatpush1.msra.mxu0 0.0
    %1659 = vmatprep.subr.mxu0 0.0
    %1660 = vmatpush1.msra.mxu0 0.0
    %1661 = vmatprep.subr.mxu0 0.0
    %1662 = vmatpush1.msra.mxu0 0.0
    %1663 = vmatprep.subr.mxu0 0.0
    %1664 = vmatpush1.msra.mxu0 0.0
    %1665 = vmatprep.subr.mxu0 0.0
    %1666 = vmatpush1.msra.mxu0 0.0
    %1667 = vmatprep.mubr.f32.mxu0 0.0
    %1668 = vmatmul.mubr.f32.gmra.mrb[0].mxu0 %v1580
    %v1669 = vpop.f32.mrb[0].mxu0
    %v1670 = vadd.f32 %v1099, %v1669
    %v1671 = vpop.f32.mrb[0].mxu0
    %1672 = vmatprep.mubr.f32.mxu0 0.0
    %1673 = vmatmul.mubr.f32.gmra.mrb[0].mxu0 %v1583
    %v1674 = vpop.f32.mrb[0].mxu0
    %v1675 = vadd.f32 %v1099, %v1674
    %v1676 = vpop.f32.mrb[0].mxu0
    %1677 = vmatprep.mubr.f32.mxu0 0.0
    %1678 = vmatmul.mubr.f32.gmra.mrb[0].mxu0 %v1586
    %v1679 = vpop.f32.mrb[0].mxu0
    %v1680 = vadd.f32 %v1099, %v1679
    %v1681 = vpop.f32.mrb[0].mxu0
    %1682 = vmatprep.mubr.f32.mxu0 0.0
    %1683 = vmatmul.mubr.f32.gmra.mrb[0].mxu0 %v1589
    %v1684 = vpop.f32.mrb[0].mxu0
    %v1685 = vadd.f32 %v1099, %v1684
    %v1686 = vpop.f32.mrb[0].mxu0
    %1687 = vmatprep.mubr.f32.mxu0 0.0
    %1688 = vmatmul.mubr.f32.gmra.mrb[0].mxu0 %v1592
    %v1689 = vpop.f32.mrb[0].mxu0
    %v1690 = vadd.f32 %v1099, %v1689
    %v1691 = vpop.f32.mrb[0].mxu0
    %1692 = vmatprep.mubr.f32.mxu0 0.0
    %1693 = vmatmul.mubr.f32.gmra.mrb[0].mxu0 %v1595
    %v1694 = vpop.f32.mrb[0].mxu0
    %v1695 = vadd.f32 %v1099, %v1694
    %v1696 = vpop.f32.mrb[0].mxu0
    %1697 = vmatprep.mubr.f32.mxu0 0.0
    %1698 = vmatmul.mubr.f32.gmra.mrb[0].mxu0 %v1598
    %v1699 = vpop.f32.mrb[0].mxu0
    %v1700 = vadd.f32 %v1099, %v1699
    %v1701 = vpop.f32.mrb[0].mxu0
    %1702 = vmatprep.mubr.f32.mxu0 0.0
    %1703 = vmatmul.mubr.f32.gmra.mrb[0].mxu0 %v1601
    %v1704 = vpop.f32.mrb[0].mxu0
    %v1705 = vadd.f32 %v1099, %v1704
    %v1706 = vpop.f32.mrb[0].mxu0
    %1707 = vdwg.mxu0
    %vm1708 = vcmp.gt.f32.partialorder %v1670, 0.0
    %vm1709 = vcmp.gt.f32.partialorder %v1675, 0.0
    %vm1710 = vcmp.gt.f32.partialorder %v1680, 0.0
    %vm1711 = vcmp.gt.f32.partialorder %v1685, 0.0
    %vm1712 = vcmp.gt.f32.partialorder %v1690, 0.0
    %vm1713 = vcmp.gt.f32.partialorder %v1695, 0.0
    %vm1714 = vcmp.gt.f32.partialorder %v1700, 0.0
    %vm1715 = vcmp.gt.f32.partialorder %v1705, 0.0
    %v1716 = vmul.f32 %v1670, 0.2
    %v1717 = vmul.f32 %v1675, 0.2
    %v1718 = vmul.f32 %v1680, 0.2
    %v1719 = vmul.f32 %v1685, 0.2
    %v1720 = vmul.f32 %v1690, 0.2
    %v1721 = vmul.f32 %v1695, 0.2
    %v1722 = vmul.f32 %v1700, 0.2
    %v1723 = vmul.f32 %v1705, 0.2
    %v1724 = vsel %vm1708, %v1670, %v1716
    %v1725 = vsel %vm1709, %v1675, %v1717
    %v1726 = vsel %vm1710, %v1680, %v1718
    %v1727 = vsel %vm1711, %v1685, %v1719
    %v1728 = vsel %vm1712, %v1690, %v1720
    %v1729 = vsel %vm1713, %v1695, %v1721
    %v1730 = vsel %vm1714, %v1700, %v1722
    %v1731 = vsel %vm1715, %v1705, %v1723
    %v1733 = vsel %vm360, %v1724, 0
    %v1736 = vsel %vm360, %v1725, 0
    %v1739 = vsel %vm360, %v1726, 0
    %v1742 = vsel %vm360, %v1727, 0
    %v1745 = vsel %vm360, %v1728, 0
    %v1748 = vsel %vm360, %v1729, 0
    %v1751 = vsel %vm360, %v1730, 0
    %v1754 = vsel %vm360, %v1731, 0
    %1756 = vmatprep.subr.mxu0 0.0
    %1757 = vmatpush1.msra.mxu0 %v911
    %1758 = vmatprep.subr.mxu0 0.0
    %1759 = vmatpush1.msra.mxu0 %v912
    %1760 = vmatprep.subr.mxu0 0.0
    %1761 = vmatpush1.msra.mxu0 %v913
    %1762 = vmatprep.subr.mxu0 0.0
    %1763 = vmatpush1.msra.mxu0 %v914
    %1764 = vmatprep.subr.mxu0 0.0
    %1765 = vmatpush1.msra.mxu0 0.0
    %1766 = vmatprep.subr.mxu0 0.0
    %1767 = vmatpush1.msra.mxu0 0.0
    %1768 = vmatprep.subr.mxu0 0.0
    %1769 = vmatpush1.msra.mxu0 0.0
    %1770 = vmatprep.subr.mxu0 0.0
    %1771 = vmatpush1.msra.mxu0 0.0
    %1772 = vmatprep.subr.mxu0 0.0
    %1773 = vmatpush1.msra.mxu0 0.0
    %1774 = vmatprep.subr.mxu0 0.0
    %1775 = vmatpush1.msra.mxu0 0.0
    %1776 = vmatprep.subr.mxu0 0.0
    %1777 = vmatpush1.msra.mxu0 0.0
    %1778 = vmatprep.subr.mxu0 0.0
    %1779 = vmatpush1.msra.mxu0 0.0
    %1780 = vmatprep.subr.mxu0 0.0
    %1781 = vmatpush1.msra.mxu0 0.0
    %1782 = vmatprep.subr.mxu0 0.0
    %1783 = vmatpush1.msra.mxu0 0.0
    %1784 = vmatprep.subr.mxu0 0.0
    %1785 = vmatpush1.msra.mxu0 0.0
    %1786 = vmatprep.subr.mxu0 0.0
    %1787 = vmatpush1.msra.mxu0 0.0
    %1788 = vmatprep.subr.mxu0 0.0
    %1789 = vmatpush1.msra.mxu0 0.0
    %1790 = vmatprep.subr.mxu0 0.0
    %1791 = vmatpush1.msra.mxu0 0.0
    %1792 = vmatprep.subr.mxu0 0.0
    %1793 = vmatpush1.msra.mxu0 0.0
    %1794 = vmatprep.subr.mxu0 0.0
    %1795 = vmatpush1.msra.mxu0 0.0
    %1796 = vmatprep.subr.mxu0 0.0
    %1797 = vmatpush1.msra.mxu0 0.0
    %1798 = vmatprep.subr.mxu0 0.0
    %1799 = vmatpush1.msra.mxu0 0.0
    %1800 = vmatprep.subr.mxu0 0.0
    %1801 = vmatpush1.msra.mxu0 0.0
    %1802 = vmatprep.subr.mxu0 0.0
    %1803 = vmatpush1.msra.mxu0 0.0
    %1804 = vmatprep.subr.mxu0 0.0
    %1805 = vmatpush1.msra.mxu0 0.0
    %1806 = vmatprep.subr.mxu0 0.0
    %1807 = vmatpush1.msra.mxu0 0.0
    %1808 = vmatprep.subr.mxu0 0.0
    %1809 = vmatpush1.msra.mxu0 0.0
    %1810 = vmatprep.subr.mxu0 0.0
    %1811 = vmatpush1.msra.mxu0 0.0
    %1812 = vmatprep.subr.mxu0 0.0
    %1813 = vmatpush1.msra.mxu0 0.0
    %1814 = vmatprep.subr.mxu0 0.0
    %1815 = vmatpush1.msra.mxu0 0.0
    %1816 = vmatprep.subr.mxu0 0.0
    %1817 = vmatpush1.msra.mxu0 0.0
    %1818 = vmatprep.subr.mxu0 0.0
    %1819 = vmatpush1.msra.mxu0 0.0
    %1820 = vmatprep.mubr.f32.mxu0 0.0
    %1821 = vmatmul.mubr.f32.gmra.mrb[0].mxu0 %v1733
    %v1822 = vpop.f32.mrb[0].mxu0
    %v1823 = vadd.f32 %v1256, %v1822
    %v1824 = vpop.f32.mrb[0].mxu0
    %1825 = vmatprep.mubr.f32.mxu0 0.0
    %1826 = vmatmul.mubr.f32.gmra.mrb[0].mxu0 %v1736
    %v1827 = vpop.f32.mrb[0].mxu0
    %v1828 = vadd.f32 %v1256, %v1827
    %v1829 = vpop.f32.mrb[0].mxu0
    %1830 = vmatprep.mubr.f32.mxu0 0.0
    %1831 = vmatmul.mubr.f32.gmra.mrb[0].mxu0 %v1739
    %v1832 = vpop.f32.mrb[0].mxu0
    %v1833 = vadd.f32 %v1256, %v1832
    %v1834 = vpop.f32.mrb[0].mxu0
    %1835 = vmatprep.mubr.f32.mxu0 0.0
    %1836 = vmatmul.mubr.f32.gmra.mrb[0].mxu0 %v1742
    %v1837 = vpop.f32.mrb[0].mxu0
    %v1838 = vadd.f32 %v1256, %v1837
    %v1839 = vpop.f32.mrb[0].mxu0
    %1840 = vmatprep.mubr.f32.mxu0 0.0
    %1841 = vmatmul.mubr.f32.gmra.mrb[0].mxu0 %v1745
    %v1842 = vpop.f32.mrb[0].mxu0
    %v1843 = vadd.f32 %v1256, %v1842
    %v1844 = vpop.f32.mrb[0].mxu0
    %1845 = vmatprep.mubr.f32.mxu0 0.0
    %1846 = vmatmul.mubr.f32.gmra.mrb[0].mxu0 %v1748
    %v1847 = vpop.f32.mrb[0].mxu0
    %v1848 = vadd.f32 %v1256, %v1847
    %v1849 = vpop.f32.mrb[0].mxu0
    %1850 = vmatprep.mubr.f32.mxu0 0.0
    %1851 = vmatmul.mubr.f32.gmra.mrb[0].mxu0 %v1751
    %v1852 = vpop.f32.mrb[0].mxu0
    %v1853 = vadd.f32 %v1256, %v1852
    %v1854 = vpop.f32.mrb[0].mxu0
    %1855 = vmatprep.mubr.f32.mxu0 0.0
    %1856 = vmatmul.mubr.f32.gmra.mrb[0].mxu0 %v1754
    %v1857 = vpop.f32.mrb[0].mxu0
    %v1858 = vadd.f32 %v1256, %v1857
    %v1859 = vpop.f32.mrb[0].mxu0
    %1860 = vdwg.mxu0
    %vm1861 = vcmp.gt.f32.partialorder %v1823, 0.0
    %vm1862 = vcmp.gt.f32.partialorder %v1828, 0.0
    %vm1863 = vcmp.gt.f32.partialorder %v1833, 0.0
    %vm1864 = vcmp.gt.f32.partialorder %v1838, 0.0
    %vm1865 = vcmp.gt.f32.partialorder %v1843, 0.0
    %vm1866 = vcmp.gt.f32.partialorder %v1848, 0.0
    %vm1867 = vcmp.gt.f32.partialorder %v1853, 0.0
    %vm1868 = vcmp.gt.f32.partialorder %v1858, 0.0
    %v1869 = vmul.f32 %v1823, 0.2
    %v1870 = vmul.f32 %v1828, 0.2
    %v1871 = vmul.f32 %v1833, 0.2
    %v1872 = vmul.f32 %v1838, 0.2
    %v1873 = vmul.f32 %v1843, 0.2
    %v1874 = vmul.f32 %v1848, 0.2
    %v1875 = vmul.f32 %v1853, 0.2
    %v1876 = vmul.f32 %v1858, 0.2
    %v1877 = vsel %vm1861, %v1823, %v1869
    %v1878 = vsel %vm1862, %v1828, %v1870
    %v1879 = vsel %vm1863, %v1833, %v1871
    %v1880 = vsel %vm1864, %v1838, %v1872
    %v1881 = vsel %vm1865, %v1843, %v1873
    %v1882 = vsel %vm1866, %v1848, %v1874
    %v1883 = vsel %vm1867, %v1853, %v1875
    %v1884 = vsel %vm1868, %v1858, %v1876
    %v1885 = vsub.f32 %v1402, %v1877
    %v1886 = vsub.f32 %v1403, %v1878
    %v1887 = vsub.f32 %v1404, %v1879
    %v1888 = vsub.f32 %v1405, %v1880
    %v1889 = vsub.f32 %v1406, %v1881
    %v1890 = vsub.f32 %v1407, %v1882
    %v1891 = vsub.f32 %v1408, %v1883
    %v1892 = vsub.f32 %v1409, %v1884
    %v1893 = vld [vmem:[#allocation2 + $0x2b8] sm:$0xff]
    %v1895 = vsel %vm106, %v1893, 0
    %1897 = vmatprep.subr.mxu0 0.0
    %1898 = vmatpush1.msra.mxu0 %v1885
    %1899 = vmatprep.subr.mxu0 0.0
    %1900 = vmatpush1.msra.mxu0 %v1886
    %1901 = vmatprep.subr.mxu0 0.0
    %1902 = vmatpush1.msra.mxu0 %v1887
    %1903 = vmatprep.subr.mxu0 0.0
    %1904 = vmatpush1.msra.mxu0 %v1888
    %1905 = vmatprep.subr.mxu0 0.0
    %1906 = vmatpush1.msra.mxu0 %v1889
    %1907 = vmatprep.subr.mxu0 0.0
    %1908 = vmatpush1.msra.mxu0 %v1890
    %1909 = vmatprep.subr.mxu0 0.0
    %1910 = vmatpush1.msra.mxu0 %v1891
    %1911 = vmatprep.subr.mxu0 0.0
    %1912 = vmatpush1.msra.mxu0 %v1892
    %1913 = vmatprep.subr.mxu0 0.0
    %1914 = vmatpush1.msra.mxu0 0.0
    %1915 = vmatprep.subr.mxu0 0.0
    %1916 = vmatpush1.msra.mxu0 0.0
    %1917 = vmatprep.subr.mxu0 0.0
    %1918 = vmatpush1.msra.mxu0 0.0
    %1919 = vmatprep.subr.mxu0 0.0
    %1920 = vmatpush1.msra.mxu0 0.0
    %1921 = vmatprep.subr.mxu0 0.0
    %1922 = vmatpush1.msra.mxu0 0.0
    %1923 = vmatprep.subr.mxu0 0.0
    %1924 = vmatpush1.msra.mxu0 0.0
    %1925 = vmatprep.subr.mxu0 0.0
    %1926 = vmatpush1.msra.mxu0 0.0
    %1927 = vmatprep.subr.mxu0 0.0
    %1928 = vmatpush1.msra.mxu0 0.0
    %1929 = vmatprep.subr.mxu0 0.0
    %1930 = vmatpush1.msra.mxu0 0.0
    %1931 = vmatprep.subr.mxu0 0.0
    %1932 = vmatpush1.msra.mxu0 0.0
    %1933 = vmatprep.subr.mxu0 0.0
    %1934 = vmatpush1.msra.mxu0 0.0
    %1935 = vmatprep.subr.mxu0 0.0
    %1936 = vmatpush1.msra.mxu0 0.0
    %1937 = vmatprep.subr.mxu0 0.0
    %1938 = vmatpush1.msra.mxu0 0.0
    %1939 = vmatprep.subr.mxu0 0.0
    %1940 = vmatpush1.msra.mxu0 0.0
    %1941 = vmatprep.subr.mxu0 0.0
    %1942 = vmatpush1.msra.mxu0 0.0
    %1943 = vmatprep.subr.mxu0 0.0
    %1944 = vmatpush1.msra.mxu0 0.0
    %1945 = vmatprep.subr.mxu0 0.0
    %1946 = vmatpush1.msra.mxu0 0.0
    %1947 = vmatprep.subr.mxu0 0.0
    %1948 = vmatpush1.msra.mxu0 0.0
    %1949 = vmatprep.subr.mxu0 0.0
    %1950 = vmatpush1.msra.mxu0 0.0
    %1951 = vmatprep.subr.mxu0 0.0
    %1952 = vmatpush1.msra.mxu0 0.0
    %1953 = vmatprep.subr.mxu0 0.0
    %1954 = vmatpush1.msra.mxu0 0.0
    %1955 = vmatprep.subr.mxu0 0.0
    %1956 = vmatpush1.msra.mxu0 0.0
    %1957 = vmatprep.subr.mxu0 0.0
    %1958 = vmatpush1.msra.mxu0 0.0
    %1959 = vmatprep.subr.mxu0 0.0
    %1960 = vmatpush1.msra.mxu0 0.0
    %1961 = vmatprep.mubr.f32.mxu0 0.0
    %1962 = vmatmul.mubr.f32.gmra.mrb[0].mxu0 %v1895
    %v1963 = vpop.f32.mrb[0].mxu0
    %v1964 = vadd.f32 0.0, %v1963
    %v1965 = vpop.f32.mrb[0].mxu0
    %1966 = vdwg.mxu0
    %v1967 = vld [vmem:[#allocation2 + $0x258] sm:$0xff]
    %v1968 = vld [vmem:[#allocation2 + $0x260] sm:$0xff]
    %v1969 = vld [vmem:[#allocation2 + $0x268] sm:$0xff]
    %v1970 = vld [vmem:[#allocation2 + $0x270] sm:$0xff]
    %v1972 = vsel %vm360, %v1964, 0
    %1974 = vmatprep.subr.mxu0 0.0
    %1975 = vmatpush1.msra.mxu0 %v1967
    %1976 = vmatprep.subr.mxu0 0.0
    %1977 = vmatpush1.msra.mxu0 %v1968
    %1978 = vmatprep.subr.mxu0 0.0
    %1979 = vmatpush1.msra.mxu0 %v1969
    %1980 = vmatprep.subr.mxu0 0.0
    %1981 = vmatpush1.msra.mxu0 %v1970
    %1982 = vmatprep.subr.mxu0 0.0
    %1983 = vmatpush1.msra.mxu0 0.0
    %1984 = vmatprep.subr.mxu0 0.0
    %1985 = vmatpush1.msra.mxu0 0.0
    %1986 = vmatprep.subr.mxu0 0.0
    %1987 = vmatpush1.msra.mxu0 0.0
    %1988 = vmatprep.subr.mxu0 0.0
    %1989 = vmatpush1.msra.mxu0 0.0
    %1990 = vmatprep.subr.mxu0 0.0
    %1991 = vmatpush1.msra.mxu0 0.0
    %1992 = vmatprep.subr.mxu0 0.0
    %1993 = vmatpush1.msra.mxu0 0.0
    %1994 = vmatprep.subr.mxu0 0.0
    %1995 = vmatpush1.msra.mxu0 0.0
    %1996 = vmatprep.subr.mxu0 0.0
    %1997 = vmatpush1.msra.mxu0 0.0
    %1998 = vmatprep.subr.mxu0 0.0
    %1999 = vmatpush1.msra.mxu0 0.0
    %2000 = vmatprep.subr.mxu0 0.0
    %2001 = vmatpush1.msra.mxu0 0.0
    %2002 = vmatprep.subr.mxu0 0.0
    %2003 = vmatpush1.msra.mxu0 0.0
    %2004 = vmatprep.subr.mxu0 0.0
    %2005 = vmatpush1.msra.mxu0 0.0
    %2006 = vmatprep.subr.mxu0 0.0
    %2007 = vmatpush1.msra.mxu0 0.0
    %2008 = vmatprep.subr.mxu0 0.0
    %2009 = vmatpush1.msra.mxu0 0.0
    %2010 = vmatprep.subr.mxu0 0.0
    %2011 = vmatpush1.msra.mxu0 0.0
    %2012 = vmatprep.subr.mxu0 0.0
    %2013 = vmatpush1.msra.mxu0 0.0
    %2014 = vmatprep.subr.mxu0 0.0
    %2015 = vmatpush1.msra.mxu0 0.0
    %2016 = vmatprep.subr.mxu0 0.0
    %2017 = vmatpush1.msra.mxu0 0.0
    %2018 = vmatprep.subr.mxu0 0.0
    %2019 = vmatpush1.msra.mxu0 0.0
    %2020 = vmatprep.subr.mxu0 0.0
    %2021 = vmatpush1.msra.mxu0 0.0
    %2022 = vmatprep.subr.mxu0 0.0
    %2023 = vmatpush1.msra.mxu0 0.0
    %2024 = vmatprep.subr.mxu0 0.0
    %2025 = vmatpush1.msra.mxu0 0.0
    %2026 = vmatprep.subr.mxu0 0.0
    %2027 = vmatpush1.msra.mxu0 0.0
    %2028 = vmatprep.subr.mxu0 0.0
    %2029 = vmatpush1.msra.mxu0 0.0
    %2030 = vmatprep.subr.mxu0 0.0
    %2031 = vmatpush1.msra.mxu0 0.0
    %2032 = vmatprep.subr.mxu0 0.0
    %2033 = vmatpush1.msra.mxu0 0.0
    %2034 = vmatprep.subr.mxu0 0.0
    %2035 = vmatpush1.msra.mxu0 0.0
    %2036 = vmatprep.subr.mxu0 0.0
    %2037 = vmatpush1.msra.mxu0 0.0
    %2038 = vmatprep.mubr.f32.mxu0 0.0
    %2039 = vmatmul.mubr.f32.gmra.mrb[0].mxu0 %v1972
    %v2040 = vpop.f32.mrb[0].mxu0
    %v2041 = vadd.f32 0.0, %v2040
    %v2042 = vpop.f32.mrb[0].mxu0
    %2043 = vdwg.mxu0
    %v2044 = vld [vmem:[%s7] sm:$0xff]
    %v2045 = vsub.f32 0.0, %v2041
    %v2046 = vmax.f32 %v2045, 0.0
    %v2047 = vand.u32 2147483647, %v2045
    %v2048 = vsub.f32 0.0, %v2047
    %v2049 = vmul.f32 %v2048, 1.442695
    %v2050 = vpow.pop %v2049
    %v2051 = vadd.f32 %v2050, 1.0
    %v2052 = vlog2.pop %v2051
    %v2053 = vmul.f32 %v2052, 0.6931472
    %v2054 = vadd.f32 %v2046, %v2053
    %v2055 = vmul.f32 %v2044, %v2054
    %v2056 = vsub.f32 1.0, %v2044
    %v2057 = vmax.f32 %v2041, 0.0
    %v2058 = vand.u32 2147483647, %v2041
    %v2059 = vsub.f32 0.0, %v2058
    %v2060 = vmul.f32 %v2059, 1.442695
    %v2061 = vpow.pop %v2060
    %v2062 = vadd.f32 %v2061, 1.0
    %v2063 = vlog2.pop %v2062
    %v2064 = vmul.f32 %v2063, 0.6931472
    %v2065 = vadd.f32 %v2057, %v2064
    %v2066 = vmul.f32 %v2056, %v2065
    %v2067 = vadd.f32 %v2055, %v2066
    %vm2068 = vcmask 7168
    %v2069 = vsel %vm2068, %v2067, 0.0
    %2070 = vadd.xlane.f32.xlu0 %v2069
    %v2071 = vpop.xlane.xlu0 %2070
    %v2072 = vrot.slane %v2071, 4
    %v2073 = vadd.f32 %v2071, %v2072
    %v2074 = vrot.slane %v2073, 2
    %v2075 = vadd.f32 %v2073, %v2074
    %v2076 = vrot.slane %v2075, 1
    %v2077 = vadd.f32 %v2075, %v2076
    %s2078 = vtos %v2077
    %vm2079 = vcmp.gt.f32.partialorder %v2041, 0.0
    %v2080 = vsel %vm2079, 1, 0
    %v2081 = vcvt.s32.f32 %v2080
    %vm2082 = vcmp.eq.f32.partialorder %v2081, %v2044
    %v2083 = vsel %vm2082, 1, 0
    %v2084 = vcvt.s32.f32 %v2083
    %v2085 = vsel %vm2068, %v2084, 0.0
    %2086 = vadd.xlane.f32.xlu0 %v2085
    %v2087 = vpop.xlane.xlu0 %2086
    %v2088 = vrot.slane %v2087, 4
    %v2089 = vadd.f32 %v2087, %v2088
    %v2090 = vrot.slane %v2089, 2
    %v2091 = vadd.f32 %v2089, %v2090
    %v2092 = vrot.slane %v2091, 1
    %v2093 = vadd.f32 %v2091, %v2092
    %s2094 = vtos %v2093
    %v2095 = vrcp.pop 8.0
    %s2096 = vtos %v2095
    %s2097 = smul.f32 %s2094, %s2096
    %v2098 = vadd.f32 %v680, 1.0
    %v2099 = vmul.f32 %v601, %v601
    %v2100 = vsub.f32 %v2098, %v2099
    %v2101 = vmul.f32 %v680, 1.442695
    %v2102 = vpow.pop %v2101
    %v2103 = vsub.f32 %v2100, %v2102
    %vm2104 = vcmask 58368
    %v2105 = vsel %vm2104, %v2103, 0.0
    %2106 = vadd.xlane.f32.xlu0 %v2105
    %v2107 = vpop.xlane.xlu0 %2106
    %v2108 = vrot.slane %v2107, 4
    %v2109 = vadd.f32 %v2107, %v2108
    %v2110 = vrot.slane %v2109, 2
    %v2111 = vadd.f32 %v2109, %v2110
    %v2112 = vrot.slane %v2111, 1
    %v2113 = vadd.f32 %v2111, %v2112
    %s2114 = vtos %v2113
    %s2115 = ssub.f32 0.0, %s2114
    %s2116 = sadd.f32 %s2078, %s2115
    %v2117 = vlaneseq
    %v2118 = vand.u32 %v2117, 127
    %vm2119 = vcmp.eq.s32.totalorder %v2118, 0
    %v2120 = vstv %s2116
    %v2121 = vsel %vm2119, %v2120, 0.0
    %vm2122 = vcmp.eq.s32.totalorder %v2118, 1
    %v2123 = vstv %s2078
    %v2124 = vsel %vm2122, %v2123, 0.0
    %v2125 = vadd.f32 %v2121, %v2124
    %vm2126 = vcmp.eq.s32.totalorder %v2118, 2
    %v2127 = vstv %s2115
    %v2128 = vsel %vm2126, %v2127, 0.0
    %v2129 = vadd.f32 %v2125, %v2128
    %vm2130 = vcmp.eq.s32.totalorder %v2118, 3
    %v2131 = vstv %s2097
    %v2132 = vsel %vm2130, %v2131, 0.0
    %v2133 = vadd.f32 %v2129, %v2132
    %2134 = vst [vmem:[%s9] sm:$0x1] %v2133
    // Predicated region
    $region42: #{vae_forward.1} parent=1 // pred_check
      _
    $region43: #{vae_forward.1} parent=1 // pred_check_branch
      %2136 = sbr.rel (0) target = $region45
    $region44: #{vae_forward.1} parent=1 // pred_region
      _
    $region45: #{vae_forward.1} parent=1 // pred_fallthru
      _
    // Predicated region
    $region46: #{vae_forward.1} parent=1 // pred_check
      _
    $region47: #{vae_forward.1} parent=1 // pred_check_branch
      %2138 = sbr.rel (0) target = $region49
    $region48: #{vae_forward.1} parent=1 // pred_region
      _
    $region49: #{vae_forward.1} parent=1 // pred_fallthru
      _
    %2139 = vsyncpa [#allocation3], 1

</llo_original>
